<compile_context>
chip_gen: v5e
topology: v5e:2x2
jax: 0.10.0
libtpu: 0.0.40
codegen_flags: <defaults>
</compile_context>

<pallas_src>
import jax
import jax.numpy as jnp
from jax.experimental import pallas as pl
from jax.experimental.pallas import tpu as pltpu

EPS = 1e-5
NEG_SLOPE = 0.2
IN_DIM = 784


# ---------------------------------------------------------------------------
# Kernel
# ---------------------------------------------------------------------------
def _bn_leaky_relu(h, gamma, beta):
    """Train-mode BatchNorm (biased var, eps=1e-5) folded to scale/shift,
    single-pass statistics (clamped variance), followed by LeakyReLU(0.2)."""
    inv_n = 1.0 / h.shape[0]
    mu = jnp.sum(h, axis=0, keepdims=True) * inv_n
    ex2 = jnp.sum(h * h, axis=0, keepdims=True) * inv_n
    var = jnp.maximum(ex2 - mu * mu, 0.0)          # clamp: no NaN from cancellation
    scale = gamma * jax.lax.rsqrt(var + EPS)
    shift = beta - mu * scale
    h = h * scale + shift
    return jnp.maximum(h, NEG_SLOPE * h)           # LeakyReLU, 2 VALU ops/elem


def discriminator_kernel(x_ref,
                         w1_ref, g1_ref, be1_ref,
                         w2_ref, g2_ref, be2_ref,
                         w3_ref, b3_ref,
                         o_ref):
    # ---- Linear(784->512); x cast to bf16 in-kernel (VPU), f32 accumulation.
    #      Bias dropped: it cancels exactly in the train-mode BatchNorm mean.
    x_bf = x_ref[...].astype(jnp.bfloat16)
    h = jnp.dot(x_bf, w1_ref[...], preferred_element_type=jnp.float32)
    h = _bn_leaky_relu(h, g1_ref[...], be1_ref[...])

    # ---- Linear(512->256) [bias dropped, same reason]; bf16 MXU inputs.
    h = jnp.dot(h.astype(jnp.bfloat16), w2_ref[...],
                preferred_element_type=jnp.float32)
    h = _bn_leaky_relu(h, g2_ref[...], be2_ref[...])

    # ---- Linear(256->1) + Sigmoid as VPU multiply + XLU lane reduce.
    # TODO(synk): at large B route this through the MXU (bf16 [256,128] RHS,
    #             take lane 0) to unload the XLU, which also carries BN stats.
    z = jnp.sum(h * w3_ref[...], axis=-1, keepdims=True) + b3_ref[...]
    o_ref[...] = 1.0 / (1.0 + jnp.exp(-z))


# ---------------------------------------------------------------------------
# Wrapper
# ---------------------------------------------------------------------------
def _vmem_budget_bytes(batch):
    # Resident footprint of the grid-less call (no pipelining => no 2x factor):
    #   bf16 weights + small f32 vectors
    weight_bytes = (IN_DIM * 512 + 512 * 256) * 2 + (2 * (512 + 256) + 256 + 1) * 4
    #   per-row: x f32 + bf16 cast, h1 f32 + bf16 cast, h2 f32, small temps
    per_row = IN_DIM * (4 + 2) + 512 * (4 + 2) + 256 * 4 + 128
    need = weight_bytes + batch * per_row + (2 << 20)   # ~2 MiB Mosaic slack
    try:
        cap = int(0.75 * pltpu.get_tpu_info().vmem_capacity_bytes)
    except Exception:
        cap = 48 << 20   # conservative fallback: 0.75 * v7x's 64 MiB
    return min(max(need, 4 << 20), cap)


def discriminator_forward(x, params):
    """x: [B, 784] float32 -> [B, 1] float32."""
    B = x.shape[0]

    args = (x,
            params["w1"], params["g1"], params["be1"],
            params["w2"], params["g2"], params["be2"],
            params["w3"], params["b3"])

    return pl.pallas_call(
        discriminator_kernel,
        out_shape=jax.ShapeDtypeStruct((B, 1), jnp.float32),
        in_specs=[pl.BlockSpec(memory_space=pltpu.MemorySpace.VMEM)] * len(args),
        out_specs=pl.BlockSpec(memory_space=pltpu.MemorySpace.VMEM),
        compiler_params=pltpu.CompilerParams(
            vmem_limit_bytes=_vmem_budget_bytes(B)),
    )(*args)


# ---------------------------------------------------------------------------
# Parameters (synthetic, PyTorch-style init) and plain-JAX reference
# ---------------------------------------------------------------------------
def init_params(key):
    ks = jax.random.split(key, 6)

    def linear(kw, kb, fan_in, fan_out):
        bound = 1.0 / jnp.sqrt(jnp.float32(fan_in))
        w = jax.random.uniform(kw, (fan_in, fan_out), jnp.float32, -bound, bound)
        b = jax.random.uniform(kb, (1, fan_out), jnp.float32, -bound, bound)
        return w, b

    w1, b1 = linear(ks[0], ks[1], IN_DIM, 512)
    w2, b2 = linear(ks[2], ks[3], 512, 256)
    w3, b3 = linear(ks[4], ks[5], 256, 1)

    return dict(
        # kernel params (bf16 weights for the big matmuls, natural 784 rows)
        w1=w1.astype(jnp.bfloat16),
        w2=w2.astype(jnp.bfloat16),
        w3=w3.reshape(1, 256),       # row vector for the VPU/XLU reduction
        b3=b3.reshape(1, 1),
        g1=jnp.ones((1, 512), jnp.float32), be1=jnp.zeros((1, 512), jnp.float32),
        g2=jnp.ones((1, 256), jnp.float32), be2=jnp.zeros((1, 256), jnp.float32),
        # reference-only (the kernel drops them because BatchNorm cancels them)
        b1=b1, b2=b2,
    )


def _ref_bn(h, gamma, beta):
    mu = jnp.mean(h, axis=0, keepdims=True)
    var = jnp.mean((h - mu) * (h - mu), axis=0, keepdims=True)  # biased var
    return (h - mu) * jax.lax.rsqrt(var + EPS) * gamma + beta


def _ref_leaky(h):
    return jnp.where(h > 0, h, NEG_SLOPE * h)


def reference_forward(x, params):
    """Plain-JAX reference with full PyTorch semantics (biases included,
    two-pass BN, unfused affine) using the same bf16 weights."""
    xb = x.astype(jnp.bfloat16)
    h = jnp.dot(xb, params["w1"], preferred_element_type=jnp.float32) + params["b1"]
    h = _ref_leaky(_ref_bn(h, params["g1"], params["be1"]))
    h = jnp.dot(h.astype(jnp.bfloat16), params["w2"],
                preferred_element_type=jnp.float32) + params["b2"]
    h = _ref_leaky(_ref_bn(h, params["g2"], params["be2"]))
    z = jnp.dot(h, params["w3"].T) + params["b3"]
    return 1.0 / (1.0 + jnp.exp(-z))


if __name__ == "__main__":
    key = jax.random.PRNGKey(0)
    kx, kp = jax.random.split(key)

    B = 8  # small batch (multiple of 8 sublanes)
    x = jax.random.normal(kx, (B, IN_DIM), jnp.float32)
    params = init_params(kp)

    out = discriminator_forward(x, params)
    out = jax.block_until_ready(out)

    ref = reference_forward(x, params)
    assert out.shape == (B, 1), out.shape
    assert jnp.allclose(out, ref, atol=1e-4, rtol=1e-4), (
        f"max err {jnp.max(jnp.abs(out - ref))}")

    print("KERNEL_OK")
</pallas_src>

<mosaic_0001>
module attributes {stable_mosaic.version = 11 : i64} {
  func.func @discriminator_kernel(%arg0: memref<8x784xf32, #tpu.memory_space<vmem>>, %arg1: memref<784x512xbf16, #tpu.memory_space<vmem>>, %arg2: memref<1x512xf32, #tpu.memory_space<vmem>>, %arg3: memref<1x512xf32, #tpu.memory_space<vmem>>, %arg4: memref<512x256xbf16, #tpu.memory_space<vmem>>, %arg5: memref<1x256xf32, #tpu.memory_space<vmem>>, %arg6: memref<1x256xf32, #tpu.memory_space<vmem>>, %arg7: memref<1x256xf32, #tpu.memory_space<vmem>>, %arg8: memref<1x1xf32, #tpu.memory_space<vmem>>, %arg9: memref<8x1xf32, #tpu.memory_space<vmem>>) attributes {dimension_semantics = [], scalar_prefetch = 0 : i64, scratch_operands = 0 : i64, tpu.core_type = #tpu.core_type<tc>} {
    %c0 = arith.constant 0 : index
    %c0_0 = arith.constant 0 : index
    %0 = vector.load %arg0[%c0, %c0_0] : memref<8x784xf32, #tpu.memory_space<vmem>>, vector<8x784xf32>
    %1 = arith.truncf %0 : vector<8x784xf32> to vector<8x784xbf16>
    %c0_1 = arith.constant 0 : index
    %c0_2 = arith.constant 0 : index
    %2 = vector.load %arg1[%c0_1, %c0_2] : memref<784x512xbf16, #tpu.memory_space<vmem>>, vector<784x512xbf16>
    %cst = arith.constant dense<0.000000e+00> : vector<8x512xf32>
    %3 = tpu.matmul %1, %2, %cst {dimension_numbers = #tpu.dot_dimension_numbers<[1], [0], [0], [1], [0, 0, 1, 1], [], []>} : vector<8x784xbf16>, vector<784x512xbf16>, vector<8x512xf32> -> vector<8x512xf32>
    %c0_3 = arith.constant 0 : index
    %c0_4 = arith.constant 0 : index
    %4 = vector.load %arg2[%c0_3, %c0_4] : memref<1x512xf32, #tpu.memory_space<vmem>>, vector<1x512xf32>
    %c0_5 = arith.constant 0 : index
    %c0_6 = arith.constant 0 : index
    %5 = vector.load %arg3[%c0_5, %c0_6] : memref<1x512xf32, #tpu.memory_space<vmem>>, vector<1x512xf32>
    %cst_7 = arith.constant dense<0.000000e+00> : vector<512xf32>
    %6 = vector.multi_reduction <add>, %3, %cst_7 [0] : vector<8x512xf32> to vector<512xf32>
    %7 = vector.shape_cast %6 : vector<512xf32> to vector<1x512xf32>
    %cst_8 = arith.constant 1.250000e-01 : f32
    %8 = vector.broadcast %cst_8 : f32 to vector<1x512xf32>
    %9 = arith.mulf %7, %8 : vector<1x512xf32>
    %10 = arith.mulf %3, %3 : vector<8x512xf32>
    %cst_9 = arith.constant dense<0.000000e+00> : vector<512xf32>
    %11 = vector.multi_reduction <add>, %10, %cst_9 [0] : vector<8x512xf32> to vector<512xf32>
    %12 = vector.shape_cast %11 : vector<512xf32> to vector<1x512xf32>
    %cst_10 = arith.constant 1.250000e-01 : f32
    %13 = vector.broadcast %cst_10 : f32 to vector<1x512xf32>
    %14 = arith.mulf %12, %13 : vector<1x512xf32>
    %15 = arith.mulf %9, %9 : vector<1x512xf32>
    %16 = arith.subf %14, %15 : vector<1x512xf32>
    %cst_11 = arith.constant 0.000000e+00 : f32
    %17 = vector.broadcast %cst_11 : f32 to vector<1x512xf32>
    %18 = arith.maximumf %16, %17 : vector<1x512xf32>
    %cst_12 = arith.constant 9.99999974E-6 : f32
    %19 = vector.broadcast %cst_12 : f32 to vector<1x512xf32>
    %20 = arith.addf %18, %19 : vector<1x512xf32>
    %21 = math.rsqrt %20 : vector<1x512xf32>
    %22 = arith.mulf %4, %21 : vector<1x512xf32>
    %23 = arith.mulf %9, %22 : vector<1x512xf32>
    %24 = arith.subf %5, %23 : vector<1x512xf32>
    %25 = vector.broadcast %22 : vector<1x512xf32> to vector<8x512xf32>
    %26 = arith.mulf %3, %25 : vector<8x512xf32>
    %27 = vector.broadcast %24 : vector<1x512xf32> to vector<8x512xf32>
    %28 = arith.addf %26, %27 : vector<8x512xf32>
    %cst_13 = arith.constant 2.000000e-01 : f32
    %29 = vector.broadcast %cst_13 : f32 to vector<8x512xf32>
    %30 = arith.mulf %29, %28 : vector<8x512xf32>
    %31 = arith.maximumf %28, %30 : vector<8x512xf32>
    %32 = arith.truncf %31 : vector<8x512xf32> to vector<8x512xbf16>
    %c0_14 = arith.constant 0 : index
    %c0_15 = arith.constant 0 : index
    %33 = vector.load %arg4[%c0_14, %c0_15] : memref<512x256xbf16, #tpu.memory_space<vmem>>, vector<512x256xbf16>
    %cst_16 = arith.constant dense<0.000000e+00> : vector<8x256xf32>
    %34 = tpu.matmul %32, %33, %cst_16 {dimension_numbers = #tpu.dot_dimension_numbers<[1], [0], [0], [1], [0, 0, 1, 1], [], []>} : vector<8x512xbf16>, vector<512x256xbf16>, vector<8x256xf32> -> vector<8x256xf32>
    %c0_17 = arith.constant 0 : index
    %c0_18 = arith.constant 0 : index
    %35 = vector.load %arg5[%c0_17, %c0_18] : memref<1x256xf32, #tpu.memory_space<vmem>>, vector<1x256xf32>
    %c0_19 = arith.constant 0 : index
    %c0_20 = arith.constant 0 : index
    %36 = vector.load %arg6[%c0_19, %c0_20] : memref<1x256xf32, #tpu.memory_space<vmem>>, vector<1x256xf32>
    %cst_21 = arith.constant dense<0.000000e+00> : vector<256xf32>
    %37 = vector.multi_reduction <add>, %34, %cst_21 [0] : vector<8x256xf32> to vector<256xf32>
    %38 = vector.shape_cast %37 : vector<256xf32> to vector<1x256xf32>
    %cst_22 = arith.constant 1.250000e-01 : f32
    %39 = vector.broadcast %cst_22 : f32 to vector<1x256xf32>
    %40 = arith.mulf %38, %39 : vector<1x256xf32>
    %41 = arith.mulf %34, %34 : vector<8x256xf32>
    %cst_23 = arith.constant dense<0.000000e+00> : vector<256xf32>
    %42 = vector.multi_reduction <add>, %41, %cst_23 [0] : vector<8x256xf32> to vector<256xf32>
    %43 = vector.shape_cast %42 : vector<256xf32> to vector<1x256xf32>
    %cst_24 = arith.constant 1.250000e-01 : f32
    %44 = vector.broadcast %cst_24 : f32 to vector<1x256xf32>
    %45 = arith.mulf %43, %44 : vector<1x256xf32>
    %46 = arith.mulf %40, %40 : vector<1x256xf32>
    %47 = arith.subf %45, %46 : vector<1x256xf32>
    %cst_25 = arith.constant 0.000000e+00 : f32
    %48 = vector.broadcast %cst_25 : f32 to vector<1x256xf32>
    %49 = arith.maximumf %47, %48 : vector<1x256xf32>
    %cst_26 = arith.constant 9.99999974E-6 : f32
    %50 = vector.broadcast %cst_26 : f32 to vector<1x256xf32>
    %51 = arith.addf %49, %50 : vector<1x256xf32>
    %52 = math.rsqrt %51 : vector<1x256xf32>
    %53 = arith.mulf %35, %52 : vector<1x256xf32>
    %54 = arith.mulf %40, %53 : vector<1x256xf32>
    %55 = arith.subf %36, %54 : vector<1x256xf32>
    %56 = vector.broadcast %53 : vector<1x256xf32> to vector<8x256xf32>
    %57 = arith.mulf %34, %56 : vector<8x256xf32>
    %58 = vector.broadcast %55 : vector<1x256xf32> to vector<8x256xf32>
    %59 = arith.addf %57, %58 : vector<8x256xf32>
    %cst_27 = arith.constant 2.000000e-01 : f32
    %60 = vector.broadcast %cst_27 : f32 to vector<8x256xf32>
    %61 = arith.mulf %60, %59 : vector<8x256xf32>
    %62 = arith.maximumf %59, %61 : vector<8x256xf32>
    %c0_28 = arith.constant 0 : index
    %c0_29 = arith.constant 0 : index
    %63 = vector.load %arg7[%c0_28, %c0_29] : memref<1x256xf32, #tpu.memory_space<vmem>>, vector<1x256xf32>
    %64 = vector.broadcast %63 : vector<1x256xf32> to vector<8x256xf32>
    %65 = arith.mulf %62, %64 : vector<8x256xf32>
    %cst_30 = arith.constant dense<0.000000e+00> : vector<8xf32>
    %66 = vector.multi_reduction <add>, %65, %cst_30 [1] : vector<8x256xf32> to vector<8xf32>
    %67 = vector.shape_cast %66 : vector<8xf32> to vector<8x1xf32>
    %c0_31 = arith.constant 0 : index
    %c0_32 = arith.constant 0 : index
    %68 = vector.load %arg8[%c0_31, %c0_32] : memref<1x1xf32, #tpu.memory_space<vmem>>, vector<1x1xf32>
    %69 = vector.broadcast %68 : vector<1x1xf32> to vector<8x1xf32>
    %70 = arith.addf %67, %69 : vector<8x1xf32>
    %cst_33 = arith.constant 0.000000e+00 : f32
    %71 = vector.broadcast %cst_33 : f32 to vector<8x1xf32>
    %72 = arith.subf %71, %70 : vector<8x1xf32>
    %73 = math.exp %72 : vector<8x1xf32>
    %cst_34 = arith.constant 1.000000e+00 : f32
    %74 = vector.broadcast %cst_34 : f32 to vector<8x1xf32>
    %75 = arith.addf %74, %73 : vector<8x1xf32>
    %cst_35 = arith.constant 1.000000e+00 : f32
    %76 = vector.broadcast %cst_35 : f32 to vector<8x1xf32>
    %77 = arith.divf %76, %75 : vector<8x1xf32>
    %c0_36 = arith.constant 0 : index
    %c0_37 = arith.constant 0 : index
    %78 = vector.load %arg9[%c0_36, %c0_37] : memref<8x1xf32, #tpu.memory_space<vmem>>, vector<8x1xf32>
    tpu.vector_store %arg9[%c0_36, %c0_37], %77 {strides = array<i32>} : memref<8x1xf32, #tpu.memory_space<vmem>>, vector<8x1xf32>,
    return
  }
}

</mosaic_0001>

<llo_original>
// kernel: tpu_custom_call.1
$region0: #{tpu_custom_call.1}
  #allocation0 [shape = 'u32[]', space=smem, size = 0x4, offset = 0x4, fixed_abs, tag = 'smem constant byte address 0x4 - core index']
  #allocation1 [shape = 'u32[72,128]{1,0:T(1,128)}', space=vmem, size = 0x9000, scoped, tag = 'internal scratch']
  #allocation2 [shape = 'f32[1,1]{1,0:T(1,128)S(1)}', space=vmem, size = 0x200, scoped, tag = 'scoped memory for tpu_custom_call.1']
  %s0 = inlined_call_operand.hbm [shape: f32[8,784], index: 0, kind: input, shape index: {}]
  %s1 = inlined_call_operand.hbm [shape: bf16[784,512], index: 1, kind: input, shape index: {}]
  %s2 = inlined_call_operand.hbm [shape: f32[1,512], index: 2, kind: input, shape index: {}]
  %s3 = inlined_call_operand.vmem [shape: f32[1,512], index: 3, kind: input, shape index: {}]
  %s4 = inlined_call_operand.hbm [shape: bf16[512,256], index: 4, kind: input, shape index: {}]
  %s5 = inlined_call_operand.vmem [shape: f32[1,256], index: 5, kind: input, shape index: {}]
  %s6 = inlined_call_operand.hbm [shape: f32[1,256], index: 6, kind: input, shape index: {}]
  %s7 = inlined_call_operand.vmem [shape: f32[1,256], index: 7, kind: input, shape index: {}]
  %s8 = inlined_call_operand.<no memory space> [shape: f32[1,1], index: 8, kind: input, shape index: {}]
  %s9 = inlined_call_operand.vmem [shape: f32[8,1], index: 9, kind: output, shape index: {}]
  %s10 = sld [smem:[#allocation0]]
  $region66: #{tpu_custom_call.1} parent=0
    _
  %s12 = ssub.s32 1, %s10
  %s13 = scalar_select 0, %s12, %s10
  %v14 = vstv %s8
  %15 = vst [vmem:[#allocation2] sm:$0x1] %v14
  $region1: #{tpu_custom_call.1} parent=0
    #allocation3 [shape = 'u8[28672]{0}', space=vmem, size = 0x7000, scoped, tag = 'input window, operand 0, single buffered']
    #allocation4 [shape = 's32[1]{0}', space=sflag, size = 0x4, scoped, tag = 'scoped memory for tpu_custom_call.1']
    #allocation5 [shape = 'u8[802816]{0}', space=vmem, size = 0xc4000, scoped, tag = 'input window, operand 1, single buffered']
    #allocation6 [shape = 's32[1]{0}', space=sflag, size = 0x4, scoped, tag = 'scoped memory for tpu_custom_call.1']
    #allocation7 [shape = 'u8[2048]{0}', space=vmem, size = 0x800, scoped, tag = 'input window, operand 2, single buffered']
    #allocation8 [shape = 'u8[262144]{0}', space=vmem, size = 0x40000, scoped, tag = 'input window, operand 4, single buffered']
    #allocation9 [shape = 's32[1]{0}', space=sflag, size = 0x4, scoped, tag = 'scoped memory for tpu_custom_call.1']
    #allocation10 [shape = 'u8[1024]{0}', space=vmem, size = 0x400, scoped, tag = 'input window, operand 6, single buffered']
    %16 = vsyncpa [#allocation4], 0
    %17 = vsyncpa [#allocation6], 0
    %18 = vsyncpa [#allocation9], 0
    // Predicated region
    $region2: #{tpu_custom_call.1} parent=1 // pred_check
      _
    $region3: #{tpu_custom_call.1} parent=1 // pred_check_branch
      %20 = sbr.rel (0) target = $region5
    $region4: #{tpu_custom_call.1} parent=1 // pred_region
      %22 = vsyncadd [#allocation4], 0
      %s24 = sshll.u32 %s0, 4
      %s25 = int_to_ptr.hbm [resolvable:$true] %s24
      %s26 = sshll.u32 [#allocation3], 4
      %s27 = int_to_ptr.vmem [resolvable:$true] %s26
      %29 = dma.hbm_to_vmem [thread:$0]  %s25, 896, %s27, [#allocation4]
    $region5: #{tpu_custom_call.1} parent=1 // pred_fallthru
      _
    // Predicated region
    $region6: #{tpu_custom_call.1} parent=1 // pred_check
      _
    $region7: #{tpu_custom_call.1} parent=1 // pred_check_branch
      %31 = sbr.rel (0) target = $region9
    $region8: #{tpu_custom_call.1} parent=1 // pred_region
      %33 = vsyncadd [#allocation6], 0
      %s34 = sshll.u32 %s1, 4
      %s35 = int_to_ptr.hbm [resolvable:$true] %s34
      %s36 = sshll.u32 [#allocation5], 4
      %s37 = int_to_ptr.vmem [resolvable:$true] %s36
      %42 = dma.hbm_to_vmem [thread:$0]  %s35, 25088, %s37, [#allocation6], 256, 256, 16
    $region9: #{tpu_custom_call.1} parent=1 // pred_fallthru
      _
    // Predicated region
    $region10: #{tpu_custom_call.1} parent=1 // pred_check
      _
    $region11: #{tpu_custom_call.1} parent=1 // pred_check_branch
      %44 = sbr.rel (0) target = $region13
    $region12: #{tpu_custom_call.1} parent=1 // pred_region
      %46 = vsyncadd [#allocation6], 0
      %s48 = sshll.u32 %s2, 4
      %s49 = int_to_ptr.hbm [resolvable:$true] %s48
      %s50 = sshll.u32 [#allocation7], 4
      %s51 = int_to_ptr.vmem [resolvable:$true] %s50
      %53 = dma.hbm_to_vmem [thread:$0]  %s49, 64, %s51, [#allocation6]
    $region13: #{tpu_custom_call.1} parent=1 // pred_fallthru
      _
    // Predicated region
    $region14: #{tpu_custom_call.1} parent=1 // pred_check
      _
    $region15: #{tpu_custom_call.1} parent=1 // pred_check_branch
      %55 = sbr.rel (0) target = $region17
    $region16: #{tpu_custom_call.1} parent=1 // pred_region
      _
    $region17: #{tpu_custom_call.1} parent=1 // pred_fallthru
      _
    // Predicated region
    $region18: #{tpu_custom_call.1} parent=1 // pred_check
      _
    $region19: #{tpu_custom_call.1} parent=1 // pred_check_branch
      %57 = sbr.rel (0) target = $region21
    $region20: #{tpu_custom_call.1} parent=1 // pred_region
      %59 = vsyncadd [#allocation9], 0
      %s60 = sshll.u32 %s4, 4
      %s61 = int_to_ptr.hbm [resolvable:$true] %s60
      %s62 = sshll.u32 [#allocation8], 4
      %s63 = int_to_ptr.vmem [resolvable:$true] %s62
      %68 = dma.hbm_to_vmem [thread:$0]  %s61, 8192, %s63, [#allocation9], 128, 128, 8
    $region21: #{tpu_custom_call.1} parent=1 // pred_fallthru
      _
    // Predicated region
    $region22: #{tpu_custom_call.1} parent=1 // pred_check
      _
    $region23: #{tpu_custom_call.1} parent=1 // pred_check_branch
      %70 = sbr.rel (0) target = $region25
    $region24: #{tpu_custom_call.1} parent=1 // pred_region
      _
    $region25: #{tpu_custom_call.1} parent=1 // pred_fallthru
      _
    // Predicated region
    $region26: #{tpu_custom_call.1} parent=1 // pred_check
      _
    $region27: #{tpu_custom_call.1} parent=1 // pred_check_branch
      %72 = sbr.rel (0) target = $region29
    $region28: #{tpu_custom_call.1} parent=1 // pred_region
      %74 = vsyncadd [#allocation9], 0
      %s76 = sshll.u32 %s6, 4
      %s77 = int_to_ptr.hbm [resolvable:$true] %s76
      %s78 = sshll.u32 [#allocation10], 4
      %s79 = int_to_ptr.vmem [resolvable:$true] %s78
      %81 = dma.hbm_to_vmem [thread:$0]  %s77, 32, %s79, [#allocation9]
    $region29: #{tpu_custom_call.1} parent=1 // pred_fallthru
      _
    // Predicated region
    $region30: #{tpu_custom_call.1} parent=1 // pred_check
      _
    $region31: #{tpu_custom_call.1} parent=1 // pred_check_branch
      %83 = sbr.rel (0) target = $region33
    $region32: #{tpu_custom_call.1} parent=1 // pred_region
      _
    $region33: #{tpu_custom_call.1} parent=1 // pred_fallthru
      _
    // Predicated region
    $region34: #{tpu_custom_call.1} parent=1 // pred_check
      _
    $region35: #{tpu_custom_call.1} parent=1 // pred_check_branch
      %85 = sbr.rel (0) target = $region37
    $region36: #{tpu_custom_call.1} parent=1 // pred_region
      _
    $region37: #{tpu_custom_call.1} parent=1 // pred_fallthru
      _
    // Predicated region
    $region38: #{tpu_custom_call.1} parent=1 // pred_check
      _
    $region39: #{tpu_custom_call.1} parent=1 // pred_check_branch
      %87 = sbr.rel (0) target = $region41
    $region40: #{tpu_custom_call.1} parent=1 // pred_region
      %89 = dma.done [#allocation4], 896
    $region41: #{tpu_custom_call.1} parent=1 // pred_fallthru
      _
    // Predicated region
    $region42: #{tpu_custom_call.1} parent=1 // pred_check
      _
    $region43: #{tpu_custom_call.1} parent=1 // pred_check_branch
      %91 = sbr.rel (0) target = $region45
    $region44: #{tpu_custom_call.1} parent=1 // pred_region
      %93 = dma.done [#allocation6], 25088
    $region45: #{tpu_custom_call.1} parent=1 // pred_fallthru
      _
    // Predicated region
    $region46: #{tpu_custom_call.1} parent=1 // pred_check
      _
    $region47: #{tpu_custom_call.1} parent=1 // pred_check_branch
      %95 = sbr.rel (0) target = $region49
    $region48: #{tpu_custom_call.1} parent=1 // pred_region
      %97 = dma.done [#allocation6], 64
    $region49: #{tpu_custom_call.1} parent=1 // pred_fallthru
      _
    // Predicated region
    $region50: #{tpu_custom_call.1} parent=1 // pred_check
      _
    $region51: #{tpu_custom_call.1} parent=1 // pred_check_branch
      %99 = sbr.rel (0) target = $region53
    $region52: #{tpu_custom_call.1} parent=1 // pred_region
      %101 = dma.done [#allocation9], 8192
    $region53: #{tpu_custom_call.1} parent=1 // pred_fallthru
      _
    // Predicated region
    $region54: #{tpu_custom_call.1} parent=1 // pred_check
      _
    $region55: #{tpu_custom_call.1} parent=1 // pred_check_branch
      %103 = sbr.rel (0) target = $region57
    $region56: #{tpu_custom_call.1} parent=1 // pred_region
      %105 = dma.done [#allocation9], 32
    $region57: #{tpu_custom_call.1} parent=1 // pred_fallthru
      _
    %v107 = vld [vmem:[#allocation3] sm:$0xff]
    %v108 = vld [vmem:[#allocation3 + $0x8] sm:$0xff]
    %v109 = vld [vmem:[#allocation3 + $0x10] sm:$0xff]
    %v110 = vld [vmem:[#allocation3 + $0x18] sm:$0xff]
    %v111 = vld [vmem:[#allocation3 + $0x20] sm:$0xff]
    %v112 = vld [vmem:[#allocation3 + $0x28] sm:$0xff]
    %v113 = vld [vmem:[#allocation3 + $0x30] sm:$0xff]
    %v114 = vpack.c.bf16 %v107, %v107
    %v115 = vpack.c.bf16 %v108, %v108
    %v116 = vpack.c.bf16 %v109, %v109
    %v117 = vpack.c.bf16 %v110, %v110
    %v118 = vpack.c.bf16 %v111, %v111
    %v119 = vpack.c.bf16 %v112, %v112
    %v120 = vpack.c.bf16 %v113, %v113
    %v121 = vld [vmem:[#allocation5] sm:$0xff]
    %v122 = vld [vmem:[#allocation5 + $0x8] sm:$0xff]
    %v123 = vld [vmem:[#allocation5 + $0x10] sm:$0xff]
    %v124 = vld [vmem:[#allocation5 + $0x18] sm:$0xff]
    %v125 = vld [vmem:[#allocation5 + $0x20] sm:$0xff]
    %v126 = vld [vmem:[#allocation5 + $0x28] sm:$0xff]
    %v127 = vld [vmem:[#allocation5 + $0x30] sm:$0xff]
    %v128 = vld [vmem:[#allocation5 + $0x38] sm:$0xff]
    %v129 = vld [vmem:[#allocation5 + $0x40] sm:$0xff]
    %v130 = vld [vmem:[#allocation5 + $0x48] sm:$0xff]
    %v131 = vld [vmem:[#allocation5 + $0x50] sm:$0xff]
    %v132 = vld [vmem:[#allocation5 + $0x58] sm:$0xff]
    %v133 = vld [vmem:[#allocation5 + $0x60] sm:$0xff]
    %v134 = vld [vmem:[#allocation5 + $0x68] sm:$0xff]
    %v135 = vld [vmem:[#allocation5 + $0x70] sm:$0xff]
    %v136 = vld [vmem:[#allocation5 + $0x78] sm:$0xff]
    %v137 = vld [vmem:[#allocation5 + $0x80] sm:$0xff]
    %v138 = vld [vmem:[#allocation5 + $0x88] sm:$0xff]
    %v139 = vld [vmem:[#allocation5 + $0x90] sm:$0xff]
    %v140 = vld [vmem:[#allocation5 + $0x98] sm:$0xff]
    %v141 = vld [vmem:[#allocation5 + $0xa0] sm:$0xff]
    %v142 = vld [vmem:[#allocation5 + $0xa8] sm:$0xff]
    %v143 = vld [vmem:[#allocation5 + $0xb0] sm:$0xff]
    %v144 = vld [vmem:[#allocation5 + $0xb8] sm:$0xff]
    %v145 = vld [vmem:[#allocation5 + $0xc0] sm:$0xff]
    %v146 = vld [vmem:[#allocation5 + $0xc8] sm:$0xff]
    %v147 = vld [vmem:[#allocation5 + $0xd0] sm:$0xff]
    %v148 = vld [vmem:[#allocation5 + $0xd8] sm:$0xff]
    %v149 = vld [vmem:[#allocation5 + $0xe0] sm:$0xff]
    %v150 = vld [vmem:[#allocation5 + $0xe8] sm:$0xff]
    %v151 = vld [vmem:[#allocation5 + $0xf0] sm:$0xff]
    %v152 = vld [vmem:[#allocation5 + $0xf8] sm:$0xff]
    %v153 = vld [vmem:[#allocation5 + $0x100] sm:$0xff]
    %v154 = vld [vmem:[#allocation5 + $0x108] sm:$0xff]
    %v155 = vld [vmem:[#allocation5 + $0x110] sm:$0xff]
    %v156 = vld [vmem:[#allocation5 + $0x118] sm:$0xff]
    %v157 = vld [vmem:[#allocation5 + $0x120] sm:$0xff]
    %v158 = vld [vmem:[#allocation5 + $0x128] sm:$0xff]
    %v159 = vld [vmem:[#allocation5 + $0x130] sm:$0xff]
    %v160 = vld [vmem:[#allocation5 + $0x138] sm:$0xff]
    %v161 = vld [vmem:[#allocation5 + $0x140] sm:$0xff]
    %v162 = vld [vmem:[#allocation5 + $0x148] sm:$0xff]
    %v163 = vld [vmem:[#allocation5 + $0x150] sm:$0xff]
    %v164 = vld [vmem:[#allocation5 + $0x158] sm:$0xff]
    %v165 = vld [vmem:[#allocation5 + $0x160] sm:$0xff]
    %v166 = vld [vmem:[#allocation5 + $0x168] sm:$0xff]
    %v167 = vld [vmem:[#allocation5 + $0x170] sm:$0xff]
    %v168 = vld [vmem:[#allocation5 + $0x178] sm:$0xff]
    %v169 = vld [vmem:[#allocation5 + $0x180] sm:$0xff]
    %v170 = vld [vmem:[#allocation5 + $0x188] sm:$0xff]
    %v171 = vld [vmem:[#allocation5 + $0x190] sm:$0xff]
    %v172 = vld [vmem:[#allocation5 + $0x198] sm:$0xff]
    %v173 = vld [vmem:[#allocation5 + $0x1a0] sm:$0xff]
    %v174 = vld [vmem:[#allocation5 + $0x1a8] sm:$0xff]
    %v175 = vld [vmem:[#allocation5 + $0x1b0] sm:$0xff]
    %v176 = vld [vmem:[#allocation5 + $0x1b8] sm:$0xff]
    %v177 = vld [vmem:[#allocation5 + $0x1c0] sm:$0xff]
    %v178 = vld [vmem:[#allocation5 + $0x1c8] sm:$0xff]
    %v179 = vld [vmem:[#allocation5 + $0x1d0] sm:$0xff]
    %v180 = vld [vmem:[#allocation5 + $0x1d8] sm:$0xff]
    %v181 = vld [vmem:[#allocation5 + $0x1e0] sm:$0xff]
    %v182 = vld [vmem:[#allocation5 + $0x1e8] sm:$0xff]
    %v183 = vld [vmem:[#allocation5 + $0x1f0] sm:$0xff]
    %v184 = vld [vmem:[#allocation5 + $0x1f8] sm:$0xff]
    %v185 = vld [vmem:[#allocation5 + $0x200] sm:$0xff]
    %v186 = vld [vmem:[#allocation5 + $0x208] sm:$0xff]
    %v187 = vld [vmem:[#allocation5 + $0x210] sm:$0xff]
    %v188 = vld [vmem:[#allocation5 + $0x218] sm:$0xff]
    %v189 = vld [vmem:[#allocation5 + $0x220] sm:$0xff]
    %v190 = vld [vmem:[#allocation5 + $0x228] sm:$0xff]
    %v191 = vld [vmem:[#allocation5 + $0x230] sm:$0xff]
    %v192 = vld [vmem:[#allocation5 + $0x238] sm:$0xff]
    %v193 = vld [vmem:[#allocation5 + $0x240] sm:$0xff]
    %v194 = vld [vmem:[#allocation5 + $0x248] sm:$0xff]
    %v195 = vld [vmem:[#allocation5 + $0x250] sm:$0xff]
    %v196 = vld [vmem:[#allocation5 + $0x258] sm:$0xff]
    %v197 = vld [vmem:[#allocation5 + $0x260] sm:$0xff]
    %v198 = vld [vmem:[#allocation5 + $0x268] sm:$0xff]
    %v199 = vld [vmem:[#allocation5 + $0x270] sm:$0xff]
    %v200 = vld [vmem:[#allocation5 + $0x278] sm:$0xff]
    %v201 = vld [vmem:[#allocation5 + $0x280] sm:$0xff]
    %v202 = vld [vmem:[#allocation5 + $0x288] sm:$0xff]
    %v203 = vld [vmem:[#allocation5 + $0x290] sm:$0xff]
    %v204 = vld [vmem:[#allocation5 + $0x298] sm:$0xff]
    %v205 = vld [vmem:[#allocation5 + $0x2a0] sm:$0xff]
    %v206 = vld [vmem:[#allocation5 + $0x2a8] sm:$0xff]
    %v207 = vld [vmem:[#allocation5 + $0x2b0] sm:$0xff]
    %v208 = vld [vmem:[#allocation5 + $0x2b8] sm:$0xff]
    %v209 = vld [vmem:[#allocation5 + $0x2c0] sm:$0xff]
    %v210 = vld [vmem:[#allocation5 + $0x2c8] sm:$0xff]
    %v211 = vld [vmem:[#allocation5 + $0x2d0] sm:$0xff]
    %v212 = vld [vmem:[#allocation5 + $0x2d8] sm:$0xff]
    %v213 = vld [vmem:[#allocation5 + $0x2e0] sm:$0xff]
    %v214 = vld [vmem:[#allocation5 + $0x2e8] sm:$0xff]
    %v215 = vld [vmem:[#allocation5 + $0x2f0] sm:$0xff]
    %v216 = vld [vmem:[#allocation5 + $0x2f8] sm:$0xff]
    %v217 = vld [vmem:[#allocation5 + $0x300] sm:$0xff]
    %v218 = vld [vmem:[#allocation5 + $0x308] sm:$0xff]
    %v219 = vld [vmem:[#allocation5 + $0x310] sm:$0xff]
    %v220 = vld [vmem:[#allocation5 + $0x318] sm:$0xff]
    %v221 = vld [vmem:[#allocation5 + $0x320] sm:$0xff]
    %v222 = vld [vmem:[#allocation5 + $0x328] sm:$0xff]
    %v223 = vld [vmem:[#allocation5 + $0x330] sm:$0xff]
    %v224 = vld [vmem:[#allocation5 + $0x338] sm:$0xff]
    %v225 = vld [vmem:[#allocation5 + $0x340] sm:$0xff]
    %v226 = vld [vmem:[#allocation5 + $0x348] sm:$0xff]
    %v227 = vld [vmem:[#allocation5 + $0x350] sm:$0xff]
    %v228 = vld [vmem:[#allocation5 + $0x358] sm:$0xff]
    %v229 = vld [vmem:[#allocation5 + $0x360] sm:$0xff]
    %v230 = vld [vmem:[#allocation5 + $0x368] sm:$0xff]
    %v231 = vld [vmem:[#allocation5 + $0x370] sm:$0xff]
    %v232 = vld [vmem:[#allocation5 + $0x378] sm:$0xff]
    %v233 = vld [vmem:[#allocation5 + $0x380] sm:$0xff]
    %v234 = vld [vmem:[#allocation5 + $0x388] sm:$0xff]
    %v235 = vld [vmem:[#allocation5 + $0x390] sm:$0xff]
    %v236 = vld [vmem:[#allocation5 + $0x398] sm:$0xff]
    %v237 = vld [vmem:[#allocation5 + $0x3a0] sm:$0xff]
    %v238 = vld [vmem:[#allocation5 + $0x3a8] sm:$0xff]
    %v239 = vld [vmem:[#allocation5 + $0x3b0] sm:$0xff]
    %v240 = vld [vmem:[#allocation5 + $0x3b8] sm:$0xff]
    %v241 = vld [vmem:[#allocation5 + $0x3c0] sm:$0xff]
    %v242 = vld [vmem:[#allocation5 + $0x3c8] sm:$0xff]
    %v243 = vld [vmem:[#allocation5 + $0x3d0] sm:$0xff]
    %v244 = vld [vmem:[#allocation5 + $0x3d8] sm:$0xff]
    %v245 = vld [vmem:[#allocation5 + $0x3e0] sm:$0xff]
    %v246 = vld [vmem:[#allocation5 + $0x3e8] sm:$0xff]
    %v247 = vld [vmem:[#allocation5 + $0x3f0] sm:$0xff]
    %v248 = vld [vmem:[#allocation5 + $0x3f8] sm:$0xff]
    %v249 = vld [vmem:[#allocation5 + $0x400] sm:$0xff]
    %v250 = vld [vmem:[#allocation5 + $0x408] sm:$0xff]
    %v251 = vld [vmem:[#allocation5 + $0x410] sm:$0xff]
    %v252 = vld [vmem:[#allocation5 + $0x418] sm:$0xff]
    %v253 = vld [vmem:[#allocation5 + $0x420] sm:$0xff]
    %v254 = vld [vmem:[#allocation5 + $0x428] sm:$0xff]
    %v255 = vld [vmem:[#allocation5 + $0x430] sm:$0xff]
    %v256 = vld [vmem:[#allocation5 + $0x438] sm:$0xff]
    %v257 = vld [vmem:[#allocation5 + $0x440] sm:$0xff]
    %v258 = vld [vmem:[#allocation5 + $0x448] sm:$0xff]
    %v259 = vld [vmem:[#allocation5 + $0x450] sm:$0xff]
    %v260 = vld [vmem:[#allocation5 + $0x458] sm:$0xff]
    %v261 = vld [vmem:[#allocation5 + $0x460] sm:$0xff]
    %v262 = vld [vmem:[#allocation5 + $0x468] sm:$0xff]
    %v263 = vld [vmem:[#allocation5 + $0x470] sm:$0xff]
    %v264 = vld [vmem:[#allocation5 + $0x478] sm:$0xff]
    %v265 = vld [vmem:[#allocation5 + $0x480] sm:$0xff]
    %v266 = vld [vmem:[#allocation5 + $0x488] sm:$0xff]
    %v267 = vld [vmem:[#allocation5 + $0x490] sm:$0xff]
    %v268 = vld [vmem:[#allocation5 + $0x498] sm:$0xff]
    %v269 = vld [vmem:[#allocation5 + $0x4a0] sm:$0xff]
    %v270 = vld [vmem:[#allocation5 + $0x4a8] sm:$0xff]
    %v271 = vld [vmem:[#allocation5 + $0x4b0] sm:$0xff]
    %v272 = vld [vmem:[#allocation5 + $0x4b8] sm:$0xff]
    %v273 = vld [vmem:[#allocation5 + $0x4c0] sm:$0xff]
    %v274 = vld [vmem:[#allocation5 + $0x4c8] sm:$0xff]
    %v275 = vld [vmem:[#allocation5 + $0x4d0] sm:$0xff]
    %v276 = vld [vmem:[#allocation5 + $0x4d8] sm:$0xff]
    %v277 = vld [vmem:[#allocation5 + $0x4e0] sm:$0xff]
    %v278 = vld [vmem:[#allocation5 + $0x4e8] sm:$0xff]
    %v279 = vld [vmem:[#allocation5 + $0x4f0] sm:$0xff]
    %v280 = vld [vmem:[#allocation5 + $0x4f8] sm:$0xff]
    %v281 = vld [vmem:[#allocation5 + $0x500] sm:$0xff]
    %v282 = vld [vmem:[#allocation5 + $0x508] sm:$0xff]
    %v283 = vld [vmem:[#allocation5 + $0x510] sm:$0xff]
    %v284 = vld [vmem:[#allocation5 + $0x518] sm:$0xff]
    %v285 = vld [vmem:[#allocation5 + $0x520] sm:$0xff]
    %v286 = vld [vmem:[#allocation5 + $0x528] sm:$0xff]
    %v287 = vld [vmem:[#allocation5 + $0x530] sm:$0xff]
    %v288 = vld [vmem:[#allocation5 + $0x538] sm:$0xff]
    %v289 = vld [vmem:[#allocation5 + $0x540] sm:$0xff]
    %v290 = vld [vmem:[#allocation5 + $0x548] sm:$0xff]
    %v291 = vld [vmem:[#allocation5 + $0x550] sm:$0xff]
    %v292 = vld [vmem:[#allocation5 + $0x558] sm:$0xff]
    %v293 = vld [vmem:[#allocation5 + $0x560] sm:$0xff]
    %v294 = vld [vmem:[#allocation5 + $0x568] sm:$0xff]
    %v295 = vld [vmem:[#allocation5 + $0x570] sm:$0xff]
    %v296 = vld [vmem:[#allocation5 + $0x578] sm:$0xff]
    %v297 = vld [vmem:[#allocation5 + $0x580] sm:$0xff]
    %v298 = vld [vmem:[#allocation5 + $0x588] sm:$0xff]
    %v299 = vld [vmem:[#allocation5 + $0x590] sm:$0xff]
    %v300 = vld [vmem:[#allocation5 + $0x598] sm:$0xff]
    %v301 = vld [vmem:[#allocation5 + $0x5a0] sm:$0xff]
    %v302 = vld [vmem:[#allocation5 + $0x5a8] sm:$0xff]
    %v303 = vld [vmem:[#allocation5 + $0x5b0] sm:$0xff]
    %v304 = vld [vmem:[#allocation5 + $0x5b8] sm:$0xff]
    %v305 = vld [vmem:[#allocation5 + $0x5c0] sm:$0xff]
    %v306 = vld [vmem:[#allocation5 + $0x5c8] sm:$0xff]
    %v307 = vld [vmem:[#allocation5 + $0x5d0] sm:$0xff]
    %v308 = vld [vmem:[#allocation5 + $0x5d8] sm:$0xff]
    %v309 = vld [vmem:[#allocation5 + $0x5e0] sm:$0xff]
    %v310 = vld [vmem:[#allocation5 + $0x5e8] sm:$0xff]
    %v311 = vld [vmem:[#allocation5 + $0x5f0] sm:$0xff]
    %v312 = vld [vmem:[#allocation5 + $0x5f8] sm:$0xff]
    %v313 = vld [vmem:[#allocation5 + $0x600] sm:$0xff]
    %v314 = vld [vmem:[#allocation5 + $0x608] sm:$0xff]
    %v315 = vld [vmem:[#allocation5 + $0x610] sm:$0xff]
    %v316 = vld [vmem:[#allocation5 + $0x618] sm:$0xff]
    %v513 = vunpack.c.l.b16 %v121
    %v514 = vunpack.c.h.b16 %v121
    %v515 = vunpack.c.l.b16 %v122
    %v516 = vunpack.c.h.b16 %v122
    %v517 = vunpack.c.l.b16 %v123
    %v518 = vunpack.c.h.b16 %v123
    %v519 = vunpack.c.l.b16 %v124
    %v520 = vunpack.c.h.b16 %v124
    %v521 = vunpack.c.l.b16 %v125
    %v522 = vunpack.c.h.b16 %v125
    %v523 = vunpack.c.l.b16 %v126
    %v524 = vunpack.c.h.b16 %v126
    %v525 = vunpack.c.l.b16 %v127
    %v526 = vunpack.c.h.b16 %v127
    %v527 = vunpack.c.l.b16 %v128
    %v528 = vunpack.c.h.b16 %v128
    %v529 = vunpack.c.l.b16 %v129
    %v530 = vunpack.c.h.b16 %v129
    %v531 = vunpack.c.l.b16 %v130
    %v532 = vunpack.c.h.b16 %v130
    %v533 = vunpack.c.l.b16 %v131
    %v534 = vunpack.c.h.b16 %v131
    %v535 = vunpack.c.l.b16 %v132
    %v536 = vunpack.c.h.b16 %v132
    %v537 = vunpack.c.l.b16 %v133
    %v538 = vunpack.c.h.b16 %v133
    %v539 = vunpack.c.l.b16 %v134
    %v540 = vunpack.c.h.b16 %v134
    %v541 = vunpack.c.l.b16 %v135
    %v542 = vunpack.c.h.b16 %v135
    %v543 = vunpack.c.l.b16 %v136
    %v544 = vunpack.c.h.b16 %v136
    %v545 = vunpack.c.l.b16 %v137
    %v546 = vunpack.c.h.b16 %v137
    %v547 = vunpack.c.l.b16 %v138
    %v548 = vunpack.c.h.b16 %v138
    %v549 = vunpack.c.l.b16 %v139
    %v550 = vunpack.c.h.b16 %v139
    %v551 = vunpack.c.l.b16 %v140
    %v552 = vunpack.c.h.b16 %v140
    %v553 = vunpack.c.l.b16 %v141
    %v554 = vunpack.c.h.b16 %v141
    %v555 = vunpack.c.l.b16 %v142
    %v556 = vunpack.c.h.b16 %v142
    %v557 = vunpack.c.l.b16 %v143
    %v558 = vunpack.c.h.b16 %v143
    %v559 = vunpack.c.l.b16 %v144
    %v560 = vunpack.c.h.b16 %v144
    %v561 = vunpack.c.l.b16 %v145
    %v562 = vunpack.c.h.b16 %v145
    %v563 = vunpack.c.l.b16 %v146
    %v564 = vunpack.c.h.b16 %v146
    %v565 = vunpack.c.l.b16 %v147
    %v566 = vunpack.c.h.b16 %v147
    %v567 = vunpack.c.l.b16 %v148
    %v568 = vunpack.c.h.b16 %v148
    %v569 = vunpack.c.l.b16 %v149
    %v570 = vunpack.c.h.b16 %v149
    %v571 = vunpack.c.l.b16 %v150
    %v572 = vunpack.c.h.b16 %v150
    %v573 = vunpack.c.l.b16 %v151
    %v574 = vunpack.c.h.b16 %v151
    %v575 = vunpack.c.l.b16 %v152
    %v576 = vunpack.c.h.b16 %v152
    %v577 = vunpack.c.l.b16 %v153
    %v578 = vunpack.c.h.b16 %v153
    %v579 = vunpack.c.l.b16 %v154
    %v580 = vunpack.c.h.b16 %v154
    %v581 = vunpack.c.l.b16 %v155
    %v582 = vunpack.c.h.b16 %v155
    %v583 = vunpack.c.l.b16 %v156
    %v584 = vunpack.c.h.b16 %v156
    %v585 = vunpack.c.l.b16 %v157
    %v586 = vunpack.c.h.b16 %v157
    %v587 = vunpack.c.l.b16 %v158
    %v588 = vunpack.c.h.b16 %v158
    %v589 = vunpack.c.l.b16 %v159
    %v590 = vunpack.c.h.b16 %v159
    %v591 = vunpack.c.l.b16 %v160
    %v592 = vunpack.c.h.b16 %v160
    %v593 = vunpack.c.l.b16 %v161
    %v594 = vunpack.c.h.b16 %v161
    %v595 = vunpack.c.l.b16 %v162
    %v596 = vunpack.c.h.b16 %v162
    %v597 = vunpack.c.l.b16 %v163
    %v598 = vunpack.c.h.b16 %v163
    %v599 = vunpack.c.l.b16 %v164
    %v600 = vunpack.c.h.b16 %v164
    %v601 = vunpack.c.l.b16 %v165
    %v602 = vunpack.c.h.b16 %v165
    %v603 = vunpack.c.l.b16 %v166
    %v604 = vunpack.c.h.b16 %v166
    %v605 = vunpack.c.l.b16 %v167
    %v606 = vunpack.c.h.b16 %v167
    %v607 = vunpack.c.l.b16 %v168
    %v608 = vunpack.c.h.b16 %v168
    %v609 = vunpack.c.l.b16 %v169
    %v610 = vunpack.c.h.b16 %v169
    %v611 = vunpack.c.l.b16 %v170
    %v612 = vunpack.c.h.b16 %v170
    %v613 = vunpack.c.l.b16 %v171
    %v614 = vunpack.c.h.b16 %v171
    %v615 = vunpack.c.l.b16 %v172
    %v616 = vunpack.c.h.b16 %v172
    %v617 = vunpack.c.l.b16 %v173
    %v618 = vunpack.c.h.b16 %v173
    %v619 = vunpack.c.l.b16 %v174
    %v620 = vunpack.c.h.b16 %v174
    %v621 = vunpack.c.l.b16 %v175
    %v622 = vunpack.c.h.b16 %v175
    %v623 = vunpack.c.l.b16 %v176
    %v624 = vunpack.c.h.b16 %v176
    %v625 = vunpack.c.l.b16 %v177
    %v626 = vunpack.c.h.b16 %v177
    %v627 = vunpack.c.l.b16 %v178
    %v628 = vunpack.c.h.b16 %v178
    %v629 = vunpack.c.l.b16 %v179
    %v630 = vunpack.c.h.b16 %v179
    %v631 = vunpack.c.l.b16 %v180
    %v632 = vunpack.c.h.b16 %v180
    %v633 = vunpack.c.l.b16 %v181
    %v634 = vunpack.c.h.b16 %v181
    %v635 = vunpack.c.l.b16 %v182
    %v636 = vunpack.c.h.b16 %v182
    %v637 = vunpack.c.l.b16 %v183
    %v638 = vunpack.c.h.b16 %v183
    %v639 = vunpack.c.l.b16 %v184
    %v640 = vunpack.c.h.b16 %v184
    %v641 = vunpack.c.l.b16 %v185
    %v642 = vunpack.c.h.b16 %v185
    %v643 = vunpack.c.l.b16 %v186
    %v644 = vunpack.c.h.b16 %v186
    %v645 = vunpack.c.l.b16 %v187
    %v646 = vunpack.c.h.b16 %v187
    %v647 = vunpack.c.l.b16 %v188
    %v648 = vunpack.c.h.b16 %v188
    %v649 = vunpack.c.l.b16 %v189
    %v650 = vunpack.c.h.b16 %v189
    %v651 = vunpack.c.l.b16 %v190
    %v652 = vunpack.c.h.b16 %v190
    %v653 = vunpack.c.l.b16 %v191
    %v654 = vunpack.c.h.b16 %v191
    %v655 = vunpack.c.l.b16 %v192
    %v656 = vunpack.c.h.b16 %v192
    %v657 = vunpack.c.l.b16 %v193
    %v658 = vunpack.c.h.b16 %v193
    %v659 = vunpack.c.l.b16 %v194
    %v660 = vunpack.c.h.b16 %v194
    %v661 = vunpack.c.l.b16 %v195
    %v662 = vunpack.c.h.b16 %v195
    %v663 = vunpack.c.l.b16 %v196
    %v664 = vunpack.c.h.b16 %v196
    %v665 = vunpack.c.l.b16 %v197
    %v666 = vunpack.c.h.b16 %v197
    %v667 = vunpack.c.l.b16 %v198
    %v668 = vunpack.c.h.b16 %v198
    %v669 = vunpack.c.l.b16 %v199
    %v670 = vunpack.c.h.b16 %v199
    %v671 = vunpack.c.l.b16 %v200
    %v672 = vunpack.c.h.b16 %v200
    %v673 = vunpack.c.l.b16 %v201
    %v674 = vunpack.c.h.b16 %v201
    %v675 = vunpack.c.l.b16 %v202
    %v676 = vunpack.c.h.b16 %v202
    %v677 = vunpack.c.l.b16 %v203
    %v678 = vunpack.c.h.b16 %v203
    %v679 = vunpack.c.l.b16 %v204
    %v680 = vunpack.c.h.b16 %v204
    %v681 = vunpack.c.l.b16 %v205
    %v682 = vunpack.c.h.b16 %v205
    %v683 = vunpack.c.l.b16 %v206
    %v684 = vunpack.c.h.b16 %v206
    %v685 = vunpack.c.l.b16 %v207
    %v686 = vunpack.c.h.b16 %v207
    %v687 = vunpack.c.l.b16 %v208
    %v688 = vunpack.c.h.b16 %v208
    %v689 = vunpack.c.l.b16 %v209
    %v690 = vunpack.c.h.b16 %v209
    %v691 = vunpack.c.l.b16 %v210
    %v692 = vunpack.c.h.b16 %v210
    %v693 = vunpack.c.l.b16 %v211
    %v694 = vunpack.c.h.b16 %v211
    %v695 = vunpack.c.l.b16 %v212
    %v696 = vunpack.c.h.b16 %v212
    %v697 = vunpack.c.l.b16 %v213
    %v698 = vunpack.c.h.b16 %v213
    %v699 = vunpack.c.l.b16 %v214
    %v700 = vunpack.c.h.b16 %v214
    %v701 = vunpack.c.l.b16 %v215
    %v702 = vunpack.c.h.b16 %v215
    %v703 = vunpack.c.l.b16 %v216
    %v704 = vunpack.c.h.b16 %v216
    %v705 = vunpack.c.l.b16 %v217
    %v706 = vunpack.c.h.b16 %v217
    %v707 = vunpack.c.l.b16 %v218
    %v708 = vunpack.c.h.b16 %v218
    %v709 = vunpack.c.l.b16 %v219
    %v710 = vunpack.c.h.b16 %v219
    %v711 = vunpack.c.l.b16 %v220
    %v712 = vunpack.c.h.b16 %v220
    %v713 = vunpack.c.l.b16 %v221
    %v714 = vunpack.c.h.b16 %v221
    %v715 = vunpack.c.l.b16 %v222
    %v716 = vunpack.c.h.b16 %v222
    %v717 = vunpack.c.l.b16 %v223
    %v718 = vunpack.c.h.b16 %v223
    %v719 = vunpack.c.l.b16 %v224
    %v720 = vunpack.c.h.b16 %v224
    %v721 = vunpack.c.l.b16 %v225
    %v722 = vunpack.c.h.b16 %v225
    %v723 = vunpack.c.l.b16 %v226
    %v724 = vunpack.c.h.b16 %v226
    %v725 = vunpack.c.l.b16 %v227
    %v726 = vunpack.c.h.b16 %v227
    %v727 = vunpack.c.l.b16 %v228
    %v728 = vunpack.c.h.b16 %v228
    %v729 = vunpack.c.l.b16 %v229
    %v730 = vunpack.c.h.b16 %v229
    %v731 = vunpack.c.l.b16 %v230
    %v732 = vunpack.c.h.b16 %v230
    %v733 = vunpack.c.l.b16 %v231
    %v734 = vunpack.c.h.b16 %v231
    %v735 = vunpack.c.l.b16 %v232
    %v736 = vunpack.c.h.b16 %v232
    %v737 = vunpack.c.l.b16 %v233
    %v738 = vunpack.c.h.b16 %v233
    %v739 = vunpack.c.l.b16 %v234
    %v740 = vunpack.c.h.b16 %v234
    %v741 = vunpack.c.l.b16 %v235
    %v742 = vunpack.c.h.b16 %v235
    %v743 = vunpack.c.l.b16 %v236
    %v744 = vunpack.c.h.b16 %v236
    %v745 = vunpack.c.l.b16 %v237
    %v746 = vunpack.c.h.b16 %v237
    %v747 = vunpack.c.l.b16 %v238
    %v748 = vunpack.c.h.b16 %v238
    %v749 = vunpack.c.l.b16 %v239
    %v750 = vunpack.c.h.b16 %v239
    %v751 = vunpack.c.l.b16 %v240
    %v752 = vunpack.c.h.b16 %v240
    %v753 = vunpack.c.l.b16 %v241
    %v754 = vunpack.c.h.b16 %v241
    %v755 = vunpack.c.l.b16 %v242
    %v756 = vunpack.c.h.b16 %v242
    %v757 = vunpack.c.l.b16 %v243
    %v758 = vunpack.c.h.b16 %v243
    %v759 = vunpack.c.l.b16 %v244
    %v760 = vunpack.c.h.b16 %v244
    %v761 = vunpack.c.l.b16 %v245
    %v762 = vunpack.c.h.b16 %v245
    %v763 = vunpack.c.l.b16 %v246
    %v764 = vunpack.c.h.b16 %v246
    %v765 = vunpack.c.l.b16 %v247
    %v766 = vunpack.c.h.b16 %v247
    %v767 = vunpack.c.l.b16 %v248
    %v768 = vunpack.c.h.b16 %v248
    %v769 = vunpack.c.l.b16 %v249
    %v770 = vunpack.c.h.b16 %v249
    %v771 = vunpack.c.l.b16 %v250
    %v772 = vunpack.c.h.b16 %v250
    %v773 = vunpack.c.l.b16 %v251
    %v774 = vunpack.c.h.b16 %v251
    %v775 = vunpack.c.l.b16 %v252
    %v776 = vunpack.c.h.b16 %v252
    %v777 = vunpack.c.l.b16 %v253
    %v778 = vunpack.c.h.b16 %v253
    %v779 = vunpack.c.l.b16 %v254
    %v780 = vunpack.c.h.b16 %v254
    %v781 = vunpack.c.l.b16 %v255
    %v782 = vunpack.c.h.b16 %v255
    %v783 = vunpack.c.l.b16 %v256
    %v784 = vunpack.c.h.b16 %v256
    %v785 = vunpack.c.l.b16 %v257
    %v786 = vunpack.c.h.b16 %v257
    %v787 = vunpack.c.l.b16 %v258
    %v788 = vunpack.c.h.b16 %v258
    %v789 = vunpack.c.l.b16 %v259
    %v790 = vunpack.c.h.b16 %v259
    %v791 = vunpack.c.l.b16 %v260
    %v792 = vunpack.c.h.b16 %v260
    %v793 = vunpack.c.l.b16 %v261
    %v794 = vunpack.c.h.b16 %v261
    %v795 = vunpack.c.l.b16 %v262
    %v796 = vunpack.c.h.b16 %v262
    %v797 = vunpack.c.l.b16 %v263
    %v798 = vunpack.c.h.b16 %v263
    %v799 = vunpack.c.l.b16 %v264
    %v800 = vunpack.c.h.b16 %v264
    %v801 = vunpack.c.l.b16 %v265
    %v802 = vunpack.c.h.b16 %v265
    %v803 = vunpack.c.l.b16 %v266
    %v804 = vunpack.c.h.b16 %v266
    %v805 = vunpack.c.l.b16 %v267
    %v806 = vunpack.c.h.b16 %v267
    %v807 = vunpack.c.l.b16 %v268
    %v808 = vunpack.c.h.b16 %v268
    %v809 = vunpack.c.l.b16 %v269
    %v810 = vunpack.c.h.b16 %v269
    %v811 = vunpack.c.l.b16 %v270
    %v812 = vunpack.c.h.b16 %v270
    %v813 = vunpack.c.l.b16 %v271
    %v814 = vunpack.c.h.b16 %v271
    %v815 = vunpack.c.l.b16 %v272
    %v816 = vunpack.c.h.b16 %v272
    %v817 = vunpack.c.l.b16 %v273
    %v818 = vunpack.c.h.b16 %v273
    %v819 = vunpack.c.l.b16 %v274
    %v820 = vunpack.c.h.b16 %v274
    %v821 = vunpack.c.l.b16 %v275
    %v822 = vunpack.c.h.b16 %v275
    %v823 = vunpack.c.l.b16 %v276
    %v824 = vunpack.c.h.b16 %v276
    %v825 = vunpack.c.l.b16 %v277
    %v826 = vunpack.c.h.b16 %v277
    %v827 = vunpack.c.l.b16 %v278
    %v828 = vunpack.c.h.b16 %v278
    %v829 = vunpack.c.l.b16 %v279
    %v830 = vunpack.c.h.b16 %v279
    %v831 = vunpack.c.l.b16 %v280
    %v832 = vunpack.c.h.b16 %v280
    %v833 = vunpack.c.l.b16 %v281
    %v834 = vunpack.c.h.b16 %v281
    %v835 = vunpack.c.l.b16 %v282
    %v836 = vunpack.c.h.b16 %v282
    %v837 = vunpack.c.l.b16 %v283
    %v838 = vunpack.c.h.b16 %v283
    %v839 = vunpack.c.l.b16 %v284
    %v840 = vunpack.c.h.b16 %v284
    %v841 = vunpack.c.l.b16 %v285
    %v842 = vunpack.c.h.b16 %v285
    %v843 = vunpack.c.l.b16 %v286
    %v844 = vunpack.c.h.b16 %v286
    %v845 = vunpack.c.l.b16 %v287
    %v846 = vunpack.c.h.b16 %v287
    %v847 = vunpack.c.l.b16 %v288
    %v848 = vunpack.c.h.b16 %v288
    %v849 = vunpack.c.l.b16 %v289
    %v850 = vunpack.c.h.b16 %v289
    %v851 = vunpack.c.l.b16 %v290
    %v852 = vunpack.c.h.b16 %v290
    %v853 = vunpack.c.l.b16 %v291
    %v854 = vunpack.c.h.b16 %v291
    %v855 = vunpack.c.l.b16 %v292
    %v856 = vunpack.c.h.b16 %v292
    %v857 = vunpack.c.l.b16 %v293
    %v858 = vunpack.c.h.b16 %v293
    %v859 = vunpack.c.l.b16 %v294
    %v860 = vunpack.c.h.b16 %v294
    %v861 = vunpack.c.l.b16 %v295
    %v862 = vunpack.c.h.b16 %v295
    %v863 = vunpack.c.l.b16 %v296
    %v864 = vunpack.c.h.b16 %v296
    %v865 = vunpack.c.l.b16 %v297
    %v866 = vunpack.c.h.b16 %v297
    %v867 = vunpack.c.l.b16 %v298
    %v868 = vunpack.c.h.b16 %v298
    %v869 = vunpack.c.l.b16 %v299
    %v870 = vunpack.c.h.b16 %v299
    %v871 = vunpack.c.l.b16 %v300
    %v872 = vunpack.c.h.b16 %v300
    %v873 = vunpack.c.l.b16 %v301
    %v874 = vunpack.c.h.b16 %v301
    %v875 = vunpack.c.l.b16 %v302
    %v876 = vunpack.c.h.b16 %v302
    %v877 = vunpack.c.l.b16 %v303
    %v878 = vunpack.c.h.b16 %v303
    %v879 = vunpack.c.l.b16 %v304
    %v880 = vunpack.c.h.b16 %v304
    %v881 = vunpack.c.l.b16 %v305
    %v882 = vunpack.c.h.b16 %v305
    %v883 = vunpack.c.l.b16 %v306
    %v884 = vunpack.c.h.b16 %v306
    %v885 = vunpack.c.l.b16 %v307
    %v886 = vunpack.c.h.b16 %v307
    %v887 = vunpack.c.l.b16 %v308
    %v888 = vunpack.c.h.b16 %v308
    %v889 = vunpack.c.l.b16 %v309
    %v890 = vunpack.c.h.b16 %v309
    %v891 = vunpack.c.l.b16 %v310
    %v892 = vunpack.c.h.b16 %v310
    %v893 = vunpack.c.l.b16 %v311
    %v894 = vunpack.c.h.b16 %v311
    %v895 = vunpack.c.l.b16 %v312
    %v896 = vunpack.c.h.b16 %v312
    %v897 = vunpack.c.l.b16 %v313
    %v898 = vunpack.c.h.b16 %v313
    %v899 = vunpack.c.l.b16 %v314
    %v900 = vunpack.c.h.b16 %v314
    %v901 = vunpack.c.l.b16 %v315
    %v902 = vunpack.c.h.b16 %v315
    %v903 = vunpack.c.l.b16 %v316
    %v904 = vunpack.c.h.b16 %v316
    %v905 = vpack.c.b16 %v517, %v513
    %v906 = vpack.c.b16 %v518, %v514
    %v907 = vpack.c.b16 %v519, %v515
    %v908 = vpack.c.b16 %v520, %v516
    %v909 = vpack.c.b16 %v525, %v521
    %v910 = vpack.c.b16 %v526, %v522
    %v911 = vpack.c.b16 %v527, %v523
    %v912 = vpack.c.b16 %v528, %v524
    %v913 = vpack.c.b16 %v533, %v529
    %v914 = vpack.c.b16 %v534, %v530
    %v915 = vpack.c.b16 %v535, %v531
    %v916 = vpack.c.b16 %v536, %v532
    %v917 = vpack.c.b16 %v541, %v537
    %v918 = vpack.c.b16 %v542, %v538
    %v919 = vpack.c.b16 %v543, %v539
    %v920 = vpack.c.b16 %v544, %v540
    %v921 = vpack.c.b16 %v549, %v545
    %v922 = vpack.c.b16 %v550, %v546
    %v923 = vpack.c.b16 %v551, %v547
    %v924 = vpack.c.b16 %v552, %v548
    %v925 = vpack.c.b16 %v557, %v553
    %v926 = vpack.c.b16 %v558, %v554
    %v927 = vpack.c.b16 %v559, %v555
    %v928 = vpack.c.b16 %v560, %v556
    %v929 = vpack.c.b16 %v565, %v561
    %v930 = vpack.c.b16 %v566, %v562
    %v931 = vpack.c.b16 %v567, %v563
    %v932 = vpack.c.b16 %v568, %v564
    %v933 = vpack.c.b16 %v573, %v569
    %v934 = vpack.c.b16 %v574, %v570
    %v935 = vpack.c.b16 %v575, %v571
    %v936 = vpack.c.b16 %v576, %v572
    %v937 = vpack.c.b16 %v581, %v577
    %v938 = vpack.c.b16 %v582, %v578
    %v939 = vpack.c.b16 %v583, %v579
    %v940 = vpack.c.b16 %v584, %v580
    %v941 = vpack.c.b16 %v589, %v585
    %v942 = vpack.c.b16 %v590, %v586
    %v943 = vpack.c.b16 %v591, %v587
    %v944 = vpack.c.b16 %v592, %v588
    %v945 = vpack.c.b16 %v597, %v593
    %v946 = vpack.c.b16 %v598, %v594
    %v947 = vpack.c.b16 %v599, %v595
    %v948 = vpack.c.b16 %v600, %v596
    %v949 = vpack.c.b16 %v605, %v601
    %v950 = vpack.c.b16 %v606, %v602
    %v951 = vpack.c.b16 %v607, %v603
    %v952 = vpack.c.b16 %v608, %v604
    %v953 = vpack.c.b16 %v613, %v609
    %v954 = vpack.c.b16 %v614, %v610
    %v955 = vpack.c.b16 %v615, %v611
    %v956 = vpack.c.b16 %v616, %v612
    %v957 = vpack.c.b16 %v621, %v617
    %v958 = vpack.c.b16 %v622, %v618
    %v959 = vpack.c.b16 %v623, %v619
    %v960 = vpack.c.b16 %v624, %v620
    %v961 = vpack.c.b16 %v629, %v625
    %v962 = vpack.c.b16 %v630, %v626
    %v963 = vpack.c.b16 %v631, %v627
    %v964 = vpack.c.b16 %v632, %v628
    %v965 = vpack.c.b16 %v637, %v633
    %v966 = vpack.c.b16 %v638, %v634
    %v967 = vpack.c.b16 %v639, %v635
    %v968 = vpack.c.b16 %v640, %v636
    %v969 = vpack.c.b16 %v645, %v641
    %v970 = vpack.c.b16 %v646, %v642
    %v971 = vpack.c.b16 %v647, %v643
    %v972 = vpack.c.b16 %v648, %v644
    %v973 = vpack.c.b16 %v653, %v649
    %v974 = vpack.c.b16 %v654, %v650
    %v975 = vpack.c.b16 %v655, %v651
    %v976 = vpack.c.b16 %v656, %v652
    %v977 = vpack.c.b16 %v661, %v657
    %v978 = vpack.c.b16 %v662, %v658
    %v979 = vpack.c.b16 %v663, %v659
    %v980 = vpack.c.b16 %v664, %v660
    %v981 = vpack.c.b16 %v669, %v665
    %v982 = vpack.c.b16 %v670, %v666
    %v983 = vpack.c.b16 %v671, %v667
    %v984 = vpack.c.b16 %v672, %v668
    %v985 = vpack.c.b16 %v677, %v673
    %v986 = vpack.c.b16 %v678, %v674
    %v987 = vpack.c.b16 %v679, %v675
    %v988 = vpack.c.b16 %v680, %v676
    %v989 = vpack.c.b16 %v685, %v681
    %v990 = vpack.c.b16 %v686, %v682
    %v991 = vpack.c.b16 %v687, %v683
    %v992 = vpack.c.b16 %v688, %v684
    %v993 = vpack.c.b16 %v693, %v689
    %v994 = vpack.c.b16 %v694, %v690
    %v995 = vpack.c.b16 %v695, %v691
    %v996 = vpack.c.b16 %v696, %v692
    %v997 = vpack.c.b16 %v701, %v697
    %v998 = vpack.c.b16 %v702, %v698
    %v999 = vpack.c.b16 %v703, %v699
    %v1000 = vpack.c.b16 %v704, %v700
    %v1001 = vpack.c.b16 %v709, %v705
    %v1002 = vpack.c.b16 %v710, %v706
    %v1003 = vpack.c.b16 %v711, %v707
    %v1004 = vpack.c.b16 %v712, %v708
    %v1005 = vpack.c.b16 %v717, %v713
    %v1006 = vpack.c.b16 %v718, %v714
    %v1007 = vpack.c.b16 %v719, %v715
    %v1008 = vpack.c.b16 %v720, %v716
    %v1009 = vpack.c.b16 %v725, %v721
    %v1010 = vpack.c.b16 %v726, %v722
    %v1011 = vpack.c.b16 %v727, %v723
    %v1012 = vpack.c.b16 %v728, %v724
    %v1013 = vpack.c.b16 %v733, %v729
    %v1014 = vpack.c.b16 %v734, %v730
    %v1015 = vpack.c.b16 %v735, %v731
    %v1016 = vpack.c.b16 %v736, %v732
    %v1017 = vpack.c.b16 %v741, %v737
    %v1018 = vpack.c.b16 %v742, %v738
    %v1019 = vpack.c.b16 %v743, %v739
    %v1020 = vpack.c.b16 %v744, %v740
    %v1021 = vpack.c.b16 %v749, %v745
    %v1022 = vpack.c.b16 %v750, %v746
    %v1023 = vpack.c.b16 %v751, %v747
    %v1024 = vpack.c.b16 %v752, %v748
    %v1025 = vpack.c.b16 %v757, %v753
    %v1026 = vpack.c.b16 %v758, %v754
    %v1027 = vpack.c.b16 %v759, %v755
    %v1028 = vpack.c.b16 %v760, %v756
    %v1029 = vpack.c.b16 %v765, %v761
    %v1030 = vpack.c.b16 %v766, %v762
    %v1031 = vpack.c.b16 %v767, %v763
    %v1032 = vpack.c.b16 %v768, %v764
    %v1033 = vpack.c.b16 %v773, %v769
    %v1034 = vpack.c.b16 %v774, %v770
    %v1035 = vpack.c.b16 %v775, %v771
    %v1036 = vpack.c.b16 %v776, %v772
    %v1037 = vpack.c.b16 %v781, %v777
    %v1038 = vpack.c.b16 %v782, %v778
    %v1039 = vpack.c.b16 %v783, %v779
    %v1040 = vpack.c.b16 %v784, %v780
    %v1041 = vpack.c.b16 %v789, %v785
    %v1042 = vpack.c.b16 %v790, %v786
    %v1043 = vpack.c.b16 %v791, %v787
    %v1044 = vpack.c.b16 %v792, %v788
    %v1045 = vpack.c.b16 %v797, %v793
    %v1046 = vpack.c.b16 %v798, %v794
    %v1047 = vpack.c.b16 %v799, %v795
    %v1048 = vpack.c.b16 %v800, %v796
    %v1049 = vpack.c.b16 %v805, %v801
    %v1050 = vpack.c.b16 %v806, %v802
    %v1051 = vpack.c.b16 %v807, %v803
    %v1052 = vpack.c.b16 %v808, %v804
    %v1053 = vpack.c.b16 %v813, %v809
    %v1054 = vpack.c.b16 %v814, %v810
    %v1055 = vpack.c.b16 %v815, %v811
    %v1056 = vpack.c.b16 %v816, %v812
    %v1057 = vpack.c.b16 %v821, %v817
    %v1058 = vpack.c.b16 %v822, %v818
    %v1059 = vpack.c.b16 %v823, %v819
    %v1060 = vpack.c.b16 %v824, %v820
    %v1061 = vpack.c.b16 %v829, %v825
    %v1062 = vpack.c.b16 %v830, %v826
    %v1063 = vpack.c.b16 %v831, %v827
    %v1064 = vpack.c.b16 %v832, %v828
    %v1065 = vpack.c.b16 %v837, %v833
    %v1066 = vpack.c.b16 %v838, %v834
    %v1067 = vpack.c.b16 %v839, %v835
    %v1068 = vpack.c.b16 %v840, %v836
    %v1069 = vpack.c.b16 %v845, %v841
    %v1070 = vpack.c.b16 %v846, %v842
    %v1071 = vpack.c.b16 %v847, %v843
    %v1072 = vpack.c.b16 %v848, %v844
    %v1073 = vpack.c.b16 %v853, %v849
    %v1074 = vpack.c.b16 %v854, %v850
    %v1075 = vpack.c.b16 %v855, %v851
    %v1076 = vpack.c.b16 %v856, %v852
    %v1077 = vpack.c.b16 %v861, %v857
    %v1078 = vpack.c.b16 %v862, %v858
    %v1079 = vpack.c.b16 %v863, %v859
    %v1080 = vpack.c.b16 %v864, %v860
    %v1081 = vpack.c.b16 %v869, %v865
    %v1082 = vpack.c.b16 %v870, %v866
    %v1083 = vpack.c.b16 %v871, %v867
    %v1084 = vpack.c.b16 %v872, %v868
    %v1085 = vpack.c.b16 %v877, %v873
    %v1086 = vpack.c.b16 %v878, %v874
    %v1087 = vpack.c.b16 %v879, %v875
    %v1088 = vpack.c.b16 %v880, %v876
    %v1089 = vpack.c.b16 %v885, %v881
    %v1090 = vpack.c.b16 %v886, %v882
    %v1091 = vpack.c.b16 %v887, %v883
    %v1092 = vpack.c.b16 %v888, %v884
    %v1093 = vpack.c.b16 %v893, %v889
    %v1094 = vpack.c.b16 %v894, %v890
    %v1095 = vpack.c.b16 %v895, %v891
    %v1096 = vpack.c.b16 %v896, %v892
    %v1097 = vpack.c.b16 %v901, %v897
    %v1098 = vpack.c.b16 %v902, %v898
    %v1099 = vpack.c.b16 %v903, %v899
    %v1100 = vpack.c.b16 %v904, %v900
    %vm1297 = vcmask 130048
    %v1299 = vsel %vm1297, %v120, 0
    %1301 = vmatpush.bf16.msra.mxu0 %v933
    %1302 = vmatpush.bf16.msra.mxu0 %v929
    %1303 = vmatpush.bf16.msra.mxu0 %v925
    %1304 = vmatpush.bf16.msra.mxu0 %v921
    %1305 = vmatpush.bf16.msra.mxu0 %v917
    %1306 = vmatpush.bf16.msra.mxu0 %v913
    %1307 = vmatpush.bf16.msra.mxu0 %v909
    %1308 = vmatpush.bf16.msra.mxu0 %v905
    %1309 = vmatmul.bf16.gmra.mxu0 %v114
    %v1310 = vpop.f32.mrf.mxu0
    %v1311 = vadd.f32 0.0, %v1310
    %v1312 = vpop.f32.mrf.mxu0
    %1313 = vdwg.mxu0
    %1314 = vmatpush.bf16.msra.mxu0 %v965
    %1315 = vmatpush.bf16.msra.mxu0 %v961
    %1316 = vmatpush.bf16.msra.mxu0 %v957
    %1317 = vmatpush.bf16.msra.mxu0 %v953
    %1318 = vmatpush.bf16.msra.mxu0 %v949
    %1319 = vmatpush.bf16.msra.mxu0 %v945
    %1320 = vmatpush.bf16.msra.mxu0 %v941
    %1321 = vmatpush.bf16.msra.mxu0 %v937
    %1322 = vmatmul.bf16.gmra.mxu0 %v115
    %v1323 = vpop.f32.mrf.mxu0
    %v1324 = vadd.f32 %v1311, %v1323
    %v1325 = vpop.f32.mrf.mxu0
    %1326 = vdwg.mxu0
    %1327 = vmatpush.bf16.msra.mxu0 %v997
    %1328 = vmatpush.bf16.msra.mxu0 %v993
    %1329 = vmatpush.bf16.msra.mxu0 %v989
    %1330 = vmatpush.bf16.msra.mxu0 %v985
    %1331 = vmatpush.bf16.msra.mxu0 %v981
    %1332 = vmatpush.bf16.msra.mxu0 %v977
    %1333 = vmatpush.bf16.msra.mxu0 %v973
    %1334 = vmatpush.bf16.msra.mxu0 %v969
    %1335 = vmatmul.bf16.gmra.mxu0 %v116
    %v1336 = vpop.f32.mrf.mxu0
    %v1337 = vadd.f32 %v1324, %v1336
    %v1338 = vpop.f32.mrf.mxu0
    %1339 = vdwg.mxu0
    %1340 = vmatpush.bf16.msra.mxu0 %v1029
    %1341 = vmatpush.bf16.msra.mxu0 %v1025
    %1342 = vmatpush.bf16.msra.mxu0 %v1021
    %1343 = vmatpush.bf16.msra.mxu0 %v1017
    %1344 = vmatpush.bf16.msra.mxu0 %v1013
    %1345 = vmatpush.bf16.msra.mxu0 %v1009
    %1346 = vmatpush.bf16.msra.mxu0 %v1005
    %1347 = vmatpush.bf16.msra.mxu0 %v1001
    %1348 = vmatmul.bf16.gmra.mxu0 %v117
    %v1349 = vpop.f32.mrf.mxu0
    %v1350 = vadd.f32 %v1337, %v1349
    %v1351 = vpop.f32.mrf.mxu0
    %1352 = vdwg.mxu0
    %1353 = vmatpush.bf16.msra.mxu0 %v1061
    %1354 = vmatpush.bf16.msra.mxu0 %v1057
    %1355 = vmatpush.bf16.msra.mxu0 %v1053
    %1356 = vmatpush.bf16.msra.mxu0 %v1049
    %1357 = vmatpush.bf16.msra.mxu0 %v1045
    %1358 = vmatpush.bf16.msra.mxu0 %v1041
    %1359 = vmatpush.bf16.msra.mxu0 %v1037
    %1360 = vmatpush.bf16.msra.mxu0 %v1033
    %1361 = vmatmul.bf16.gmra.mxu0 %v118
    %v1362 = vpop.f32.mrf.mxu0
    %v1363 = vadd.f32 %v1350, %v1362
    %v1364 = vpop.f32.mrf.mxu0
    %1365 = vdwg.mxu0
    %1366 = vmatpush.bf16.msra.mxu0 %v1093
    %1367 = vmatpush.bf16.msra.mxu0 %v1089
    %1368 = vmatpush.bf16.msra.mxu0 %v1085
    %1369 = vmatpush.bf16.msra.mxu0 %v1081
    %1370 = vmatpush.bf16.msra.mxu0 %v1077
    %1371 = vmatpush.bf16.msra.mxu0 %v1073
    %1372 = vmatpush.bf16.msra.mxu0 %v1069
    %1373 = vmatpush.bf16.msra.mxu0 %v1065
    %1374 = vmatmul.bf16.gmra.mxu0 %v119
    %v1375 = vpop.f32.mrf.mxu0
    %v1376 = vadd.f32 %v1363, %v1375
    %v1377 = vpop.f32.mrf.mxu0
    %1378 = vdwg.mxu0
    %1379 = vmatpush.bf16.msra.mxu0 0
    %1380 = vmatpush.bf16.msra.mxu0 0
    %1381 = vmatpush.bf16.msra.mxu0 0
    %1382 = vmatpush.bf16.msra.mxu0 0
    %1383 = vmatpush.bf16.msra.mxu0 0
    %1384 = vmatpush.bf16.msra.mxu0 0
    %1385 = vmatpush.bf16.msra.mxu0 0
    %1386 = vmatpush.bf16.msra.mxu0 %v1097
    %1387 = vmatmul.bf16.gmra.mxu0 %v1299
    %v1388 = vpop.f32.mrf.mxu0
    %v1389 = vadd.f32 %v1376, %v1388
    %v1390 = vpop.f32.mrf.mxu0
    %1391 = vdwg.mxu0
    %1392 = vmatpush.bf16.msra.mxu0 %v934
    %1393 = vmatpush.bf16.msra.mxu0 %v930
    %1394 = vmatpush.bf16.msra.mxu0 %v926
    %1395 = vmatpush.bf16.msra.mxu0 %v922
    %1396 = vmatpush.bf16.msra.mxu0 %v918
    %1397 = vmatpush.bf16.msra.mxu0 %v914
    %1398 = vmatpush.bf16.msra.mxu0 %v910
    %1399 = vmatpush.bf16.msra.mxu0 %v906
    %1400 = vmatmul.bf16.gmra.mxu0 %v114
    %v1401 = vpop.f32.mrf.mxu0
    %v1402 = vadd.f32 0.0, %v1401
    %v1403 = vpop.f32.mrf.mxu0
    %1404 = vdwg.mxu0
    %1405 = vmatpush.bf16.msra.mxu0 %v966
    %1406 = vmatpush.bf16.msra.mxu0 %v962
    %1407 = vmatpush.bf16.msra.mxu0 %v958
    %1408 = vmatpush.bf16.msra.mxu0 %v954
    %1409 = vmatpush.bf16.msra.mxu0 %v950
    %1410 = vmatpush.bf16.msra.mxu0 %v946
    %1411 = vmatpush.bf16.msra.mxu0 %v942
    %1412 = vmatpush.bf16.msra.mxu0 %v938
    %1413 = vmatmul.bf16.gmra.mxu0 %v115
    %v1414 = vpop.f32.mrf.mxu0
    %v1415 = vadd.f32 %v1402, %v1414
    %v1416 = vpop.f32.mrf.mxu0
    %1417 = vdwg.mxu0
    %1418 = vmatpush.bf16.msra.mxu0 %v998
    %1419 = vmatpush.bf16.msra.mxu0 %v994
    %1420 = vmatpush.bf16.msra.mxu0 %v990
    %1421 = vmatpush.bf16.msra.mxu0 %v986
    %1422 = vmatpush.bf16.msra.mxu0 %v982
    %1423 = vmatpush.bf16.msra.mxu0 %v978
    %1424 = vmatpush.bf16.msra.mxu0 %v974
    %1425 = vmatpush.bf16.msra.mxu0 %v970
    %1426 = vmatmul.bf16.gmra.mxu0 %v116
    %v1427 = vpop.f32.mrf.mxu0
    %v1428 = vadd.f32 %v1415, %v1427
    %v1429 = vpop.f32.mrf.mxu0
    %1430 = vdwg.mxu0
    %1431 = vmatpush.bf16.msra.mxu0 %v1030
    %1432 = vmatpush.bf16.msra.mxu0 %v1026
    %1433 = vmatpush.bf16.msra.mxu0 %v1022
    %1434 = vmatpush.bf16.msra.mxu0 %v1018
    %1435 = vmatpush.bf16.msra.mxu0 %v1014
    %1436 = vmatpush.bf16.msra.mxu0 %v1010
    %1437 = vmatpush.bf16.msra.mxu0 %v1006
    %1438 = vmatpush.bf16.msra.mxu0 %v1002
    %1439 = vmatmul.bf16.gmra.mxu0 %v117
    %v1440 = vpop.f32.mrf.mxu0
    %v1441 = vadd.f32 %v1428, %v1440
    %v1442 = vpop.f32.mrf.mxu0
    %1443 = vdwg.mxu0
    %1444 = vmatpush.bf16.msra.mxu0 %v1062
    %1445 = vmatpush.bf16.msra.mxu0 %v1058
    %1446 = vmatpush.bf16.msra.mxu0 %v1054
    %1447 = vmatpush.bf16.msra.mxu0 %v1050
    %1448 = vmatpush.bf16.msra.mxu0 %v1046
    %1449 = vmatpush.bf16.msra.mxu0 %v1042
    %1450 = vmatpush.bf16.msra.mxu0 %v1038
    %1451 = vmatpush.bf16.msra.mxu0 %v1034
    %1452 = vmatmul.bf16.gmra.mxu0 %v118
    %v1453 = vpop.f32.mrf.mxu0
    %v1454 = vadd.f32 %v1441, %v1453
    %v1455 = vpop.f32.mrf.mxu0
    %1456 = vdwg.mxu0
    %1457 = vmatpush.bf16.msra.mxu0 %v1094
    %1458 = vmatpush.bf16.msra.mxu0 %v1090
    %1459 = vmatpush.bf16.msra.mxu0 %v1086
    %1460 = vmatpush.bf16.msra.mxu0 %v1082
    %1461 = vmatpush.bf16.msra.mxu0 %v1078
    %1462 = vmatpush.bf16.msra.mxu0 %v1074
    %1463 = vmatpush.bf16.msra.mxu0 %v1070
    %1464 = vmatpush.bf16.msra.mxu0 %v1066
    %1465 = vmatmul.bf16.gmra.mxu0 %v119
    %v1466 = vpop.f32.mrf.mxu0
    %v1467 = vadd.f32 %v1454, %v1466
    %v1468 = vpop.f32.mrf.mxu0
    %1469 = vdwg.mxu0
    %1470 = vmatpush.bf16.msra.mxu0 0
    %1471 = vmatpush.bf16.msra.mxu0 0
    %1472 = vmatpush.bf16.msra.mxu0 0
    %1473 = vmatpush.bf16.msra.mxu0 0
    %1474 = vmatpush.bf16.msra.mxu0 0
    %1475 = vmatpush.bf16.msra.mxu0 0
    %1476 = vmatpush.bf16.msra.mxu0 0
    %1477 = vmatpush.bf16.msra.mxu0 %v1098
    %1478 = vmatmul.bf16.gmra.mxu0 %v1299
    %v1479 = vpop.f32.mrf.mxu0
    %v1480 = vadd.f32 %v1467, %v1479
    %v1481 = vpop.f32.mrf.mxu0
    %1482 = vdwg.mxu0
    %1483 = vmatpush.bf16.msra.mxu0 %v935
    %1484 = vmatpush.bf16.msra.mxu0 %v931
    %1485 = vmatpush.bf16.msra.mxu0 %v927
    %1486 = vmatpush.bf16.msra.mxu0 %v923
    %1487 = vmatpush.bf16.msra.mxu0 %v919
    %1488 = vmatpush.bf16.msra.mxu0 %v915
    %1489 = vmatpush.bf16.msra.mxu0 %v911
    %1490 = vmatpush.bf16.msra.mxu0 %v907
    %1491 = vmatmul.bf16.gmra.mxu0 %v114
    %v1492 = vpop.f32.mrf.mxu0
    %v1493 = vadd.f32 0.0, %v1492
    %v1494 = vpop.f32.mrf.mxu0
    %1495 = vdwg.mxu0
    %1496 = vmatpush.bf16.msra.mxu0 %v967
    %1497 = vmatpush.bf16.msra.mxu0 %v963
    %1498 = vmatpush.bf16.msra.mxu0 %v959
    %1499 = vmatpush.bf16.msra.mxu0 %v955
    %1500 = vmatpush.bf16.msra.mxu0 %v951
    %1501 = vmatpush.bf16.msra.mxu0 %v947
    %1502 = vmatpush.bf16.msra.mxu0 %v943
    %1503 = vmatpush.bf16.msra.mxu0 %v939
    %1504 = vmatmul.bf16.gmra.mxu0 %v115
    %v1505 = vpop.f32.mrf.mxu0
    %v1506 = vadd.f32 %v1493, %v1505
    %v1507 = vpop.f32.mrf.mxu0
    %1508 = vdwg.mxu0
    %1509 = vmatpush.bf16.msra.mxu0 %v999
    %1510 = vmatpush.bf16.msra.mxu0 %v995
    %1511 = vmatpush.bf16.msra.mxu0 %v991
    %1512 = vmatpush.bf16.msra.mxu0 %v987
    %1513 = vmatpush.bf16.msra.mxu0 %v983
    %1514 = vmatpush.bf16.msra.mxu0 %v979
    %1515 = vmatpush.bf16.msra.mxu0 %v975
    %1516 = vmatpush.bf16.msra.mxu0 %v971
    %1517 = vmatmul.bf16.gmra.mxu0 %v116
    %v1518 = vpop.f32.mrf.mxu0
    %v1519 = vadd.f32 %v1506, %v1518
    %v1520 = vpop.f32.mrf.mxu0
    %1521 = vdwg.mxu0
    %1522 = vmatpush.bf16.msra.mxu0 %v1031
    %1523 = vmatpush.bf16.msra.mxu0 %v1027
    %1524 = vmatpush.bf16.msra.mxu0 %v1023
    %1525 = vmatpush.bf16.msra.mxu0 %v1019
    %1526 = vmatpush.bf16.msra.mxu0 %v1015
    %1527 = vmatpush.bf16.msra.mxu0 %v1011
    %1528 = vmatpush.bf16.msra.mxu0 %v1007
    %1529 = vmatpush.bf16.msra.mxu0 %v1003
    %1530 = vmatmul.bf16.gmra.mxu0 %v117
    %v1531 = vpop.f32.mrf.mxu0
    %v1532 = vadd.f32 %v1519, %v1531
    %v1533 = vpop.f32.mrf.mxu0
    %1534 = vdwg.mxu0
    %1535 = vmatpush.bf16.msra.mxu0 %v1063
    %1536 = vmatpush.bf16.msra.mxu0 %v1059
    %1537 = vmatpush.bf16.msra.mxu0 %v1055
    %1538 = vmatpush.bf16.msra.mxu0 %v1051
    %1539 = vmatpush.bf16.msra.mxu0 %v1047
    %1540 = vmatpush.bf16.msra.mxu0 %v1043
    %1541 = vmatpush.bf16.msra.mxu0 %v1039
    %1542 = vmatpush.bf16.msra.mxu0 %v1035
    %1543 = vmatmul.bf16.gmra.mxu0 %v118
    %v1544 = vpop.f32.mrf.mxu0
    %v1545 = vadd.f32 %v1532, %v1544
    %v1546 = vpop.f32.mrf.mxu0
    %1547 = vdwg.mxu0
    %1548 = vmatpush.bf16.msra.mxu0 %v1095
    %1549 = vmatpush.bf16.msra.mxu0 %v1091
    %1550 = vmatpush.bf16.msra.mxu0 %v1087
    %1551 = vmatpush.bf16.msra.mxu0 %v1083
    %1552 = vmatpush.bf16.msra.mxu0 %v1079
    %1553 = vmatpush.bf16.msra.mxu0 %v1075
    %1554 = vmatpush.bf16.msra.mxu0 %v1071
    %1555 = vmatpush.bf16.msra.mxu0 %v1067
    %1556 = vmatmul.bf16.gmra.mxu0 %v119
    %v1557 = vpop.f32.mrf.mxu0
    %v1558 = vadd.f32 %v1545, %v1557
    %v1559 = vpop.f32.mrf.mxu0
    %1560 = vdwg.mxu0
    %1561 = vmatpush.bf16.msra.mxu0 0
    %1562 = vmatpush.bf16.msra.mxu0 0
    %1563 = vmatpush.bf16.msra.mxu0 0
    %1564 = vmatpush.bf16.msra.mxu0 0
    %1565 = vmatpush.bf16.msra.mxu0 0
    %1566 = vmatpush.bf16.msra.mxu0 0
    %1567 = vmatpush.bf16.msra.mxu0 0
    %1568 = vmatpush.bf16.msra.mxu0 %v1099
    %1569 = vmatmul.bf16.gmra.mxu0 %v1299
    %v1570 = vpop.f32.mrf.mxu0
    %v1571 = vadd.f32 %v1558, %v1570
    %v1572 = vpop.f32.mrf.mxu0
    %1573 = vdwg.mxu0
    %1574 = vmatpush.bf16.msra.mxu0 %v936
    %1575 = vmatpush.bf16.msra.mxu0 %v932
    %1576 = vmatpush.bf16.msra.mxu0 %v928
    %1577 = vmatpush.bf16.msra.mxu0 %v924
    %1578 = vmatpush.bf16.msra.mxu0 %v920
    %1579 = vmatpush.bf16.msra.mxu0 %v916
    %1580 = vmatpush.bf16.msra.mxu0 %v912
    %1581 = vmatpush.bf16.msra.mxu0 %v908
    %1582 = vmatmul.bf16.gmra.mxu0 %v114
    %v1583 = vpop.f32.mrf.mxu0
    %v1584 = vadd.f32 0.0, %v1583
    %v1585 = vpop.f32.mrf.mxu0
    %1586 = vdwg.mxu0
    %1587 = vmatpush.bf16.msra.mxu0 %v968
    %1588 = vmatpush.bf16.msra.mxu0 %v964
    %1589 = vmatpush.bf16.msra.mxu0 %v960
    %1590 = vmatpush.bf16.msra.mxu0 %v956
    %1591 = vmatpush.bf16.msra.mxu0 %v952
    %1592 = vmatpush.bf16.msra.mxu0 %v948
    %1593 = vmatpush.bf16.msra.mxu0 %v944
    %1594 = vmatpush.bf16.msra.mxu0 %v940
    %1595 = vmatmul.bf16.gmra.mxu0 %v115
    %v1596 = vpop.f32.mrf.mxu0
    %v1597 = vadd.f32 %v1584, %v1596
    %v1598 = vpop.f32.mrf.mxu0
    %1599 = vdwg.mxu0
    %1600 = vmatpush.bf16.msra.mxu0 %v1000
    %1601 = vmatpush.bf16.msra.mxu0 %v996
    %1602 = vmatpush.bf16.msra.mxu0 %v992
    %1603 = vmatpush.bf16.msra.mxu0 %v988
    %1604 = vmatpush.bf16.msra.mxu0 %v984
    %1605 = vmatpush.bf16.msra.mxu0 %v980
    %1606 = vmatpush.bf16.msra.mxu0 %v976
    %1607 = vmatpush.bf16.msra.mxu0 %v972
    %1608 = vmatmul.bf16.gmra.mxu0 %v116
    %v1609 = vpop.f32.mrf.mxu0
    %v1610 = vadd.f32 %v1597, %v1609
    %v1611 = vpop.f32.mrf.mxu0
    %1612 = vdwg.mxu0
    %1613 = vmatpush.bf16.msra.mxu0 %v1032
    %1614 = vmatpush.bf16.msra.mxu0 %v1028
    %1615 = vmatpush.bf16.msra.mxu0 %v1024
    %1616 = vmatpush.bf16.msra.mxu0 %v1020
    %1617 = vmatpush.bf16.msra.mxu0 %v1016
    %1618 = vmatpush.bf16.msra.mxu0 %v1012
    %1619 = vmatpush.bf16.msra.mxu0 %v1008
    %1620 = vmatpush.bf16.msra.mxu0 %v1004
    %1621 = vmatmul.bf16.gmra.mxu0 %v117
    %v1622 = vpop.f32.mrf.mxu0
    %v1623 = vadd.f32 %v1610, %v1622
    %v1624 = vpop.f32.mrf.mxu0
    %1625 = vdwg.mxu0
    %1626 = vmatpush.bf16.msra.mxu0 %v1064
    %1627 = vmatpush.bf16.msra.mxu0 %v1060
    %1628 = vmatpush.bf16.msra.mxu0 %v1056
    %1629 = vmatpush.bf16.msra.mxu0 %v1052
    %1630 = vmatpush.bf16.msra.mxu0 %v1048
    %1631 = vmatpush.bf16.msra.mxu0 %v1044
    %1632 = vmatpush.bf16.msra.mxu0 %v1040
    %1633 = vmatpush.bf16.msra.mxu0 %v1036
    %1634 = vmatmul.bf16.gmra.mxu0 %v118
    %v1635 = vpop.f32.mrf.mxu0
    %v1636 = vadd.f32 %v1623, %v1635
    %v1637 = vpop.f32.mrf.mxu0
    %1638 = vdwg.mxu0
    %1639 = vmatpush.bf16.msra.mxu0 %v1096
    %1640 = vmatpush.bf16.msra.mxu0 %v1092
    %1641 = vmatpush.bf16.msra.mxu0 %v1088
    %1642 = vmatpush.bf16.msra.mxu0 %v1084
    %1643 = vmatpush.bf16.msra.mxu0 %v1080
    %1644 = vmatpush.bf16.msra.mxu0 %v1076
    %1645 = vmatpush.bf16.msra.mxu0 %v1072
    %1646 = vmatpush.bf16.msra.mxu0 %v1068
    %1647 = vmatmul.bf16.gmra.mxu0 %v119
    %v1648 = vpop.f32.mrf.mxu0
    %v1649 = vadd.f32 %v1636, %v1648
    %v1650 = vpop.f32.mrf.mxu0
    %1651 = vdwg.mxu0
    %1652 = vmatpush.bf16.msra.mxu0 0
    %1653 = vmatpush.bf16.msra.mxu0 0
    %1654 = vmatpush.bf16.msra.mxu0 0
    %1655 = vmatpush.bf16.msra.mxu0 0
    %1656 = vmatpush.bf16.msra.mxu0 0
    %1657 = vmatpush.bf16.msra.mxu0 0
    %1658 = vmatpush.bf16.msra.mxu0 0
    %1659 = vmatpush.bf16.msra.mxu0 %v1100
    %1660 = vmatmul.bf16.gmra.mxu0 %v1299
    %v1661 = vpop.f32.mrf.mxu0
    %v1662 = vadd.f32 %v1649, %v1661
    %v1663 = vpop.f32.mrf.mxu0
    %1664 = vdwg.mxu0
    %v1665 = vld [vmem:[#allocation7] sm:$0xf]
    %v1666 = vld [vmem:[%s3] sm:$0xf]
    %v1667 = vrot.slane %v1389, 4
    %v1668 = vadd.f32 %v1389, %v1667
    %v1669 = vrot.slane %v1668, 2
    %v1670 = vadd.f32 %v1668, %v1669
    %v1671 = vrot.slane %v1670, 1
    %v1672 = vadd.f32 %v1670, %v1671
    %v1673 = vrot.slane %v1480, 4
    %v1674 = vadd.f32 %v1480, %v1673
    %v1675 = vrot.slane %v1674, 2
    %v1676 = vadd.f32 %v1674, %v1675
    %v1677 = vrot.slane %v1676, 1
    %v1678 = vadd.f32 %v1676, %v1677
    %v1679 = vrot.slane %v1571, 4
    %v1680 = vadd.f32 %v1571, %v1679
    %v1681 = vrot.slane %v1680, 2
    %v1682 = vadd.f32 %v1680, %v1681
    %v1683 = vrot.slane %v1682, 1
    %v1684 = vadd.f32 %v1682, %v1683
    %v1685 = vrot.slane %v1662, 4
    %v1686 = vadd.f32 %v1662, %v1685
    %v1687 = vrot.slane %v1686, 2
    %v1688 = vadd.f32 %v1686, %v1687
    %v1689 = vrot.slane %v1688, 1
    %v1690 = vadd.f32 %v1688, %v1689
    %v1691 = vmul.f32 %v1672, 0.125
    %v1692 = vmul.f32 %v1678, 0.125
    %v1693 = vmul.f32 %v1684, 0.125
    %v1694 = vmul.f32 %v1690, 0.125
    %v1695 = vmul.f32 %v1389, %v1389
    %v1696 = vmul.f32 %v1480, %v1480
    %v1697 = vmul.f32 %v1571, %v1571
    %v1698 = vmul.f32 %v1662, %v1662
    %v1699 = vrot.slane %v1695, 4
    %v1700 = vadd.f32 %v1695, %v1699
    %v1701 = vrot.slane %v1700, 2
    %v1702 = vadd.f32 %v1700, %v1701
    %v1703 = vrot.slane %v1702, 1
    %v1704 = vadd.f32 %v1702, %v1703
    %v1705 = vrot.slane %v1696, 4
    %v1706 = vadd.f32 %v1696, %v1705
    %v1707 = vrot.slane %v1706, 2
    %v1708 = vadd.f32 %v1706, %v1707
    %v1709 = vrot.slane %v1708, 1
    %v1710 = vadd.f32 %v1708, %v1709
    %v1711 = vrot.slane %v1697, 4
    %v1712 = vadd.f32 %v1697, %v1711
    %v1713 = vrot.slane %v1712, 2
    %v1714 = vadd.f32 %v1712, %v1713
    %v1715 = vrot.slane %v1714, 1
    %v1716 = vadd.f32 %v1714, %v1715
    %v1717 = vrot.slane %v1698, 4
    %v1718 = vadd.f32 %v1698, %v1717
    %v1719 = vrot.slane %v1718, 2
    %v1720 = vadd.f32 %v1718, %v1719
    %v1721 = vrot.slane %v1720, 1
    %v1722 = vadd.f32 %v1720, %v1721
    %v1723 = vmul.f32 %v1704, 0.125
    %v1724 = vmul.f32 %v1710, 0.125
    %v1725 = vmul.f32 %v1716, 0.125
    %v1726 = vmul.f32 %v1722, 0.125
    %v1727 = vmul.f32 %v1691, %v1691
    %v1728 = vmul.f32 %v1692, %v1692
    %v1729 = vmul.f32 %v1693, %v1693
    %v1730 = vmul.f32 %v1694, %v1694
    %v1731 = vsub.f32 %v1723, %v1727
    %v1732 = vsub.f32 %v1724, %v1728
    %v1733 = vsub.f32 %v1725, %v1729
    %v1734 = vsub.f32 %v1726, %v1730
    %v1735 = vmax.f32 %v1731, 0.0
    %v1736 = vmax.f32 %v1732, 0.0
    %v1737 = vmax.f32 %v1733, 0.0
    %v1738 = vmax.f32 %v1734, 0.0
    %v1739 = vadd.f32 %v1735, 1e-05
    %v1740 = vadd.f32 %v1736, 1e-05
    %v1741 = vadd.f32 %v1737, 1e-05
    %v1742 = vadd.f32 %v1738, 1e-05
    %v1743 = vrsqrt.pop %v1739
    %v1744 = vmul.f32 %v1743, %v1739
    %v1745 = vmul.f32 %v1744, %v1743
    %v1746 = vmul.f32 0.5, %v1745
    %v1747 = vsub.f32 1.5, %v1746
    %v1748 = vmul.f32 %v1743, %v1747
    %vm1749 = vweird.f32 %v1739
    %vm1750 = vweird.f32 %v1743
    %vm1751 = vmor %vm1749, %vm1750
    %v1752 = vsel %vm1751, %v1743, %v1748
    %v1753 = vrsqrt.pop %v1740
    %v1754 = vmul.f32 %v1753, %v1740
    %v1755 = vmul.f32 %v1754, %v1753
    %v1756 = vmul.f32 0.5, %v1755
    %v1757 = vsub.f32 1.5, %v1756
    %v1758 = vmul.f32 %v1753, %v1757
    %vm1759 = vweird.f32 %v1740
    %vm1760 = vweird.f32 %v1753
    %vm1761 = vmor %vm1759, %vm1760
    %v1762 = vsel %vm1761, %v1753, %v1758
    %v1763 = vrsqrt.pop %v1741
    %v1764 = vmul.f32 %v1763, %v1741
    %v1765 = vmul.f32 %v1764, %v1763
    %v1766 = vmul.f32 0.5, %v1765
    %v1767 = vsub.f32 1.5, %v1766
    %v1768 = vmul.f32 %v1763, %v1767
    %vm1769 = vweird.f32 %v1741
    %vm1770 = vweird.f32 %v1763
    %vm1771 = vmor %vm1769, %vm1770
    %v1772 = vsel %vm1771, %v1763, %v1768
    %v1773 = vrsqrt.pop %v1742
    %v1774 = vmul.f32 %v1773, %v1742
    %v1775 = vmul.f32 %v1774, %v1773
    %v1776 = vmul.f32 0.5, %v1775
    %v1777 = vsub.f32 1.5, %v1776
    %v1778 = vmul.f32 %v1773, %v1777
    %vm1779 = vweird.f32 %v1742
    %vm1780 = vweird.f32 %v1773
    %vm1781 = vmor %vm1779, %vm1780
    %v1782 = vsel %vm1781, %v1773, %v1778
    %v1787 = vrot.slane %v1762, 7
    %v1788 = vrot.slane %v1772, 6
    %v1789 = vrot.slane %v1782, 5
    %vm1790 = vcmask 1040384
    %v1791 = vsel %vm1790, %v1752, %v1787
    %vm1792 = vcmask 1042434
    %v1793 = vsel %vm1792, %v1788, %v1789
    %vm1794 = vcmask 1041408
    %v1795 = vsel %vm1794, %v1791, %v1793
    %v1797 = vmul.f32 %v1665, %v1795
    %v1799 = vperm.slane %v1797, 0
    %v1800 = vperm.slane %v1797, 1
    %v1801 = vperm.slane %v1797, 2
    %v1802 = vperm.slane %v1797, 3
    %v1807 = vmul.f32 %v1691, %v1799
    %v1808 = vmul.f32 %v1692, %v1800
    %v1809 = vmul.f32 %v1693, %v1801
    %v1810 = vmul.f32 %v1694, %v1802
    %v1815 = vrot.slane %v1808, 7
    %v1816 = vrot.slane %v1809, 6
    %v1817 = vrot.slane %v1810, 5
    %v1818 = vsel %vm1790, %v1807, %v1815
    %v1819 = vsel %vm1792, %v1816, %v1817
    %v1820 = vsel %vm1794, %v1818, %v1819
    %v1822 = vsub.f32 %v1666, %v1820
    %v1823 = vmul.f32 %v1389, %v1799
    %v1824 = vmul.f32 %v1480, %v1800
    %v1825 = vmul.f32 %v1571, %v1801
    %v1826 = vmul.f32 %v1662, %v1802
    %v1828 = vperm.slane %v1822, 0
    %v1829 = vperm.slane %v1822, 1
    %v1830 = vperm.slane %v1822, 2
    %v1831 = vperm.slane %v1822, 3
    %v1836 = vadd.f32 %v1823, %v1828
    %v1837 = vadd.f32 %v1824, %v1829
    %v1838 = vadd.f32 %v1825, %v1830
    %v1839 = vadd.f32 %v1826, %v1831
    %v1840 = vmul.f32 %v1836, 0.2
    %v1841 = vmul.f32 %v1837, 0.2
    %v1842 = vmul.f32 %v1838, 0.2
    %v1843 = vmul.f32 %v1839, 0.2
    %v1844 = vmax.f32 %v1836, %v1840
    %v1845 = vmax.f32 %v1837, %v1841
    %v1846 = vmax.f32 %v1838, %v1842
    %v1847 = vmax.f32 %v1839, %v1843
    %v1848 = vpack.c.bf16 %v1844, %v1844
    %v1849 = vpack.c.bf16 %v1845, %v1845
    %v1850 = vpack.c.bf16 %v1846, %v1846
    %v1851 = vpack.c.bf16 %v1847, %v1847
    %v1852 = vld [vmem:[#allocation8] sm:$0xff]
    %v1853 = vld [vmem:[#allocation8 + $0x8] sm:$0xff]
    %v1854 = vld [vmem:[#allocation8 + $0x10] sm:$0xff]
    %v1855 = vld [vmem:[#allocation8 + $0x18] sm:$0xff]
    %v1856 = vld [vmem:[#allocation8 + $0x20] sm:$0xff]
    %v1857 = vld [vmem:[#allocation8 + $0x28] sm:$0xff]
    %v1858 = vld [vmem:[#allocation8 + $0x30] sm:$0xff]
    %v1859 = vld [vmem:[#allocation8 + $0x38] sm:$0xff]
    %v1860 = vld [vmem:[#allocation8 + $0x40] sm:$0xff]
    %v1861 = vld [vmem:[#allocation8 + $0x48] sm:$0xff]
    %v1862 = vld [vmem:[#allocation8 + $0x50] sm:$0xff]
    %v1863 = vld [vmem:[#allocation8 + $0x58] sm:$0xff]
    %v1864 = vld [vmem:[#allocation8 + $0x60] sm:$0xff]
    %v1865 = vld [vmem:[#allocation8 + $0x68] sm:$0xff]
    %v1866 = vld [vmem:[#allocation8 + $0x70] sm:$0xff]
    %v1867 = vld [vmem:[#allocation8 + $0x78] sm:$0xff]
    %v1868 = vld [vmem:[#allocation8 + $0x80] sm:$0xff]
    %v1869 = vld [vmem:[#allocation8 + $0x88] sm:$0xff]
    %v1870 = vld [vmem:[#allocation8 + $0x90] sm:$0xff]
    %v1871 = vld [vmem:[#allocation8 + $0x98] sm:$0xff]
    %v1872 = vld [vmem:[#allocation8 + $0xa0] sm:$0xff]
    %v1873 = vld [vmem:[#allocation8 + $0xa8] sm:$0xff]
    %v1874 = vld [vmem:[#allocation8 + $0xb0] sm:$0xff]
    %v1875 = vld [vmem:[#allocation8 + $0xb8] sm:$0xff]
    %v1876 = vld [vmem:[#allocation8 + $0xc0] sm:$0xff]
    %v1877 = vld [vmem:[#allocation8 + $0xc8] sm:$0xff]
    %v1878 = vld [vmem:[#allocation8 + $0xd0] sm:$0xff]
    %v1879 = vld [vmem:[#allocation8 + $0xd8] sm:$0xff]
    %v1880 = vld [vmem:[#allocation8 + $0xe0] sm:$0xff]
    %v1881 = vld [vmem:[#allocation8 + $0xe8] sm:$0xff]
    %v1882 = vld [vmem:[#allocation8 + $0xf0] sm:$0xff]
    %v1883 = vld [vmem:[#allocation8 + $0xf8] sm:$0xff]
    %v1884 = vld [vmem:[#allocation8 + $0x100] sm:$0xff]
    %v1885 = vld [vmem:[#allocation8 + $0x108] sm:$0xff]
    %v1886 = vld [vmem:[#allocation8 + $0x110] sm:$0xff]
    %v1887 = vld [vmem:[#allocation8 + $0x118] sm:$0xff]
    %v1888 = vld [vmem:[#allocation8 + $0x120] sm:$0xff]
    %v1889 = vld [vmem:[#allocation8 + $0x128] sm:$0xff]
    %v1890 = vld [vmem:[#allocation8 + $0x130] sm:$0xff]
    %v1891 = vld [vmem:[#allocation8 + $0x138] sm:$0xff]
    %v1892 = vld [vmem:[#allocation8 + $0x140] sm:$0xff]
    %v1893 = vld [vmem:[#allocation8 + $0x148] sm:$0xff]
    %v1894 = vld [vmem:[#allocation8 + $0x150] sm:$0xff]
    %v1895 = vld [vmem:[#allocation8 + $0x158] sm:$0xff]
    %v1896 = vld [vmem:[#allocation8 + $0x160] sm:$0xff]
    %v1897 = vld [vmem:[#allocation8 + $0x168] sm:$0xff]
    %v1898 = vld [vmem:[#allocation8 + $0x170] sm:$0xff]
    %v1899 = vld [vmem:[#allocation8 + $0x178] sm:$0xff]
    %v1900 = vld [vmem:[#allocation8 + $0x180] sm:$0xff]
    %v1901 = vld [vmem:[#allocation8 + $0x188] sm:$0xff]
    %v1902 = vld [vmem:[#allocation8 + $0x190] sm:$0xff]
    %v1903 = vld [vmem:[#allocation8 + $0x198] sm:$0xff]
    %v1904 = vld [vmem:[#allocation8 + $0x1a0] sm:$0xff]
    %v1905 = vld [vmem:[#allocation8 + $0x1a8] sm:$0xff]
    %v1906 = vld [vmem:[#allocation8 + $0x1b0] sm:$0xff]
    %v1907 = vld [vmem:[#allocation8 + $0x1b8] sm:$0xff]
    %v1908 = vld [vmem:[#allocation8 + $0x1c0] sm:$0xff]
    %v1909 = vld [vmem:[#allocation8 + $0x1c8] sm:$0xff]
    %v1910 = vld [vmem:[#allocation8 + $0x1d0] sm:$0xff]
    %v1911 = vld [vmem:[#allocation8 + $0x1d8] sm:$0xff]
    %v1912 = vld [vmem:[#allocation8 + $0x1e0] sm:$0xff]
    %v1913 = vld [vmem:[#allocation8 + $0x1e8] sm:$0xff]
    %v1914 = vld [vmem:[#allocation8 + $0x1f0] sm:$0xff]
    %v1915 = vld [vmem:[#allocation8 + $0x1f8] sm:$0xff]
    %v1980 = vunpack.c.l.b16 %v1852
    %v1981 = vunpack.c.h.b16 %v1852
    %v1982 = vunpack.c.l.b16 %v1853
    %v1983 = vunpack.c.h.b16 %v1853
    %v1984 = vunpack.c.l.b16 %v1854
    %v1985 = vunpack.c.h.b16 %v1854
    %v1986 = vunpack.c.l.b16 %v1855
    %v1987 = vunpack.c.h.b16 %v1855
    %v1988 = vunpack.c.l.b16 %v1856
    %v1989 = vunpack.c.h.b16 %v1856
    %v1990 = vunpack.c.l.b16 %v1857
    %v1991 = vunpack.c.h.b16 %v1857
    %v1992 = vunpack.c.l.b16 %v1858
    %v1993 = vunpack.c.h.b16 %v1858
    %v1994 = vunpack.c.l.b16 %v1859
    %v1995 = vunpack.c.h.b16 %v1859
    %v1996 = vunpack.c.l.b16 %v1860
    %v1997 = vunpack.c.h.b16 %v1860
    %v1998 = vunpack.c.l.b16 %v1861
    %v1999 = vunpack.c.h.b16 %v1861
    %v2000 = vunpack.c.l.b16 %v1862
    %v2001 = vunpack.c.h.b16 %v1862
    %v2002 = vunpack.c.l.b16 %v1863
    %v2003 = vunpack.c.h.b16 %v1863
    %v2004 = vunpack.c.l.b16 %v1864
    %v2005 = vunpack.c.h.b16 %v1864
    %v2006 = vunpack.c.l.b16 %v1865
    %v2007 = vunpack.c.h.b16 %v1865
    %v2008 = vunpack.c.l.b16 %v1866
    %v2009 = vunpack.c.h.b16 %v1866
    %v2010 = vunpack.c.l.b16 %v1867
    %v2011 = vunpack.c.h.b16 %v1867
    %v2012 = vunpack.c.l.b16 %v1868
    %v2013 = vunpack.c.h.b16 %v1868
    %v2014 = vunpack.c.l.b16 %v1869
    %v2015 = vunpack.c.h.b16 %v1869
    %v2016 = vunpack.c.l.b16 %v1870
    %v2017 = vunpack.c.h.b16 %v1870
    %v2018 = vunpack.c.l.b16 %v1871
    %v2019 = vunpack.c.h.b16 %v1871
    %v2020 = vunpack.c.l.b16 %v1872
    %v2021 = vunpack.c.h.b16 %v1872
    %v2022 = vunpack.c.l.b16 %v1873
    %v2023 = vunpack.c.h.b16 %v1873
    %v2024 = vunpack.c.l.b16 %v1874
    %v2025 = vunpack.c.h.b16 %v1874
    %v2026 = vunpack.c.l.b16 %v1875
    %v2027 = vunpack.c.h.b16 %v1875
    %v2028 = vunpack.c.l.b16 %v1876
    %v2029 = vunpack.c.h.b16 %v1876
    %v2030 = vunpack.c.l.b16 %v1877
    %v2031 = vunpack.c.h.b16 %v1877
    %v2032 = vunpack.c.l.b16 %v1878
    %v2033 = vunpack.c.h.b16 %v1878
    %v2034 = vunpack.c.l.b16 %v1879
    %v2035 = vunpack.c.h.b16 %v1879
    %v2036 = vunpack.c.l.b16 %v1880
    %v2037 = vunpack.c.h.b16 %v1880
    %v2038 = vunpack.c.l.b16 %v1881
    %v2039 = vunpack.c.h.b16 %v1881
    %v2040 = vunpack.c.l.b16 %v1882
    %v2041 = vunpack.c.h.b16 %v1882
    %v2042 = vunpack.c.l.b16 %v1883
    %v2043 = vunpack.c.h.b16 %v1883
    %v2044 = vunpack.c.l.b16 %v1884
    %v2045 = vunpack.c.h.b16 %v1884
    %v2046 = vunpack.c.l.b16 %v1885
    %v2047 = vunpack.c.h.b16 %v1885
    %v2048 = vunpack.c.l.b16 %v1886
    %v2049 = vunpack.c.h.b16 %v1886
    %v2050 = vunpack.c.l.b16 %v1887
    %v2051 = vunpack.c.h.b16 %v1887
    %v2052 = vunpack.c.l.b16 %v1888
    %v2053 = vunpack.c.h.b16 %v1888
    %v2054 = vunpack.c.l.b16 %v1889
    %v2055 = vunpack.c.h.b16 %v1889
    %v2056 = vunpack.c.l.b16 %v1890
    %v2057 = vunpack.c.h.b16 %v1890
    %v2058 = vunpack.c.l.b16 %v1891
    %v2059 = vunpack.c.h.b16 %v1891
    %v2060 = vunpack.c.l.b16 %v1892
    %v2061 = vunpack.c.h.b16 %v1892
    %v2062 = vunpack.c.l.b16 %v1893
    %v2063 = vunpack.c.h.b16 %v1893
    %v2064 = vunpack.c.l.b16 %v1894
    %v2065 = vunpack.c.h.b16 %v1894
    %v2066 = vunpack.c.l.b16 %v1895
    %v2067 = vunpack.c.h.b16 %v1895
    %v2068 = vunpack.c.l.b16 %v1896
    %v2069 = vunpack.c.h.b16 %v1896
    %v2070 = vunpack.c.l.b16 %v1897
    %v2071 = vunpack.c.h.b16 %v1897
    %v2072 = vunpack.c.l.b16 %v1898
    %v2073 = vunpack.c.h.b16 %v1898
    %v2074 = vunpack.c.l.b16 %v1899
    %v2075 = vunpack.c.h.b16 %v1899
    %v2076 = vunpack.c.l.b16 %v1900
    %v2077 = vunpack.c.h.b16 %v1900
    %v2078 = vunpack.c.l.b16 %v1901
    %v2079 = vunpack.c.h.b16 %v1901
    %v2080 = vunpack.c.l.b16 %v1902
    %v2081 = vunpack.c.h.b16 %v1902
    %v2082 = vunpack.c.l.b16 %v1903
    %v2083 = vunpack.c.h.b16 %v1903
    %v2084 = vunpack.c.l.b16 %v1904
    %v2085 = vunpack.c.h.b16 %v1904
    %v2086 = vunpack.c.l.b16 %v1905
    %v2087 = vunpack.c.h.b16 %v1905
    %v2088 = vunpack.c.l.b16 %v1906
    %v2089 = vunpack.c.h.b16 %v1906
    %v2090 = vunpack.c.l.b16 %v1907
    %v2091 = vunpack.c.h.b16 %v1907
    %v2092 = vunpack.c.l.b16 %v1908
    %v2093 = vunpack.c.h.b16 %v1908
    %v2094 = vunpack.c.l.b16 %v1909
    %v2095 = vunpack.c.h.b16 %v1909
    %v2096 = vunpack.c.l.b16 %v1910
    %v2097 = vunpack.c.h.b16 %v1910
    %v2098 = vunpack.c.l.b16 %v1911
    %v2099 = vunpack.c.h.b16 %v1911
    %v2100 = vunpack.c.l.b16 %v1912
    %v2101 = vunpack.c.h.b16 %v1912
    %v2102 = vunpack.c.l.b16 %v1913
    %v2103 = vunpack.c.h.b16 %v1913
    %v2104 = vunpack.c.l.b16 %v1914
    %v2105 = vunpack.c.h.b16 %v1914
    %v2106 = vunpack.c.l.b16 %v1915
    %v2107 = vunpack.c.h.b16 %v1915
    %v2108 = vpack.c.b16 %v1982, %v1980
    %v2109 = vpack.c.b16 %v1983, %v1981
    %v2110 = vpack.c.b16 %v1986, %v1984
    %v2111 = vpack.c.b16 %v1987, %v1985
    %v2112 = vpack.c.b16 %v1990, %v1988
    %v2113 = vpack.c.b16 %v1991, %v1989
    %v2114 = vpack.c.b16 %v1994, %v1992
    %v2115 = vpack.c.b16 %v1995, %v1993
    %v2116 = vpack.c.b16 %v1998, %v1996
    %v2117 = vpack.c.b16 %v1999, %v1997
    %v2118 = vpack.c.b16 %v2002, %v2000
    %v2119 = vpack.c.b16 %v2003, %v2001
    %v2120 = vpack.c.b16 %v2006, %v2004
    %v2121 = vpack.c.b16 %v2007, %v2005
    %v2122 = vpack.c.b16 %v2010, %v2008
    %v2123 = vpack.c.b16 %v2011, %v2009
    %v2124 = vpack.c.b16 %v2014, %v2012
    %v2125 = vpack.c.b16 %v2015, %v2013
    %v2126 = vpack.c.b16 %v2018, %v2016
    %v2127 = vpack.c.b16 %v2019, %v2017
    %v2128 = vpack.c.b16 %v2022, %v2020
    %v2129 = vpack.c.b16 %v2023, %v2021
    %v2130 = vpack.c.b16 %v2026, %v2024
    %v2131 = vpack.c.b16 %v2027, %v2025
    %v2132 = vpack.c.b16 %v2030, %v2028
    %v2133 = vpack.c.b16 %v2031, %v2029
    %v2134 = vpack.c.b16 %v2034, %v2032
    %v2135 = vpack.c.b16 %v2035, %v2033
    %v2136 = vpack.c.b16 %v2038, %v2036
    %v2137 = vpack.c.b16 %v2039, %v2037
    %v2138 = vpack.c.b16 %v2042, %v2040
    %v2139 = vpack.c.b16 %v2043, %v2041
    %v2140 = vpack.c.b16 %v2046, %v2044
    %v2141 = vpack.c.b16 %v2047, %v2045
    %v2142 = vpack.c.b16 %v2050, %v2048
    %v2143 = vpack.c.b16 %v2051, %v2049
    %v2144 = vpack.c.b16 %v2054, %v2052
    %v2145 = vpack.c.b16 %v2055, %v2053
    %v2146 = vpack.c.b16 %v2058, %v2056
    %v2147 = vpack.c.b16 %v2059, %v2057
    %v2148 = vpack.c.b16 %v2062, %v2060
    %v2149 = vpack.c.b16 %v2063, %v2061
    %v2150 = vpack.c.b16 %v2066, %v2064
    %v2151 = vpack.c.b16 %v2067, %v2065
    %v2152 = vpack.c.b16 %v2070, %v2068
    %v2153 = vpack.c.b16 %v2071, %v2069
    %v2154 = vpack.c.b16 %v2074, %v2072
    %v2155 = vpack.c.b16 %v2075, %v2073
    %v2156 = vpack.c.b16 %v2078, %v2076
    %v2157 = vpack.c.b16 %v2079, %v2077
    %v2158 = vpack.c.b16 %v2082, %v2080
    %v2159 = vpack.c.b16 %v2083, %v2081
    %v2160 = vpack.c.b16 %v2086, %v2084
    %v2161 = vpack.c.b16 %v2087, %v2085
    %v2162 = vpack.c.b16 %v2090, %v2088
    %v2163 = vpack.c.b16 %v2091, %v2089
    %v2164 = vpack.c.b16 %v2094, %v2092
    %v2165 = vpack.c.b16 %v2095, %v2093
    %v2166 = vpack.c.b16 %v2098, %v2096
    %v2167 = vpack.c.b16 %v2099, %v2097
    %v2168 = vpack.c.b16 %v2102, %v2100
    %v2169 = vpack.c.b16 %v2103, %v2101
    %v2170 = vpack.c.b16 %v2106, %v2104
    %v2171 = vpack.c.b16 %v2107, %v2105
    %2236 = vmatpush.bf16.msra.mxu0 %v2122
    %2237 = vmatpush.bf16.msra.mxu0 %v2120
    %2238 = vmatpush.bf16.msra.mxu0 %v2118
    %2239 = vmatpush.bf16.msra.mxu0 %v2116
    %2240 = vmatpush.bf16.msra.mxu0 %v2114
    %2241 = vmatpush.bf16.msra.mxu0 %v2112
    %2242 = vmatpush.bf16.msra.mxu0 %v2110
    %2243 = vmatpush.bf16.msra.mxu0 %v2108
    %2244 = vmatmul.bf16.gmra.mxu0 %v1848
    %v2245 = vpop.f32.mrf.mxu0
    %v2246 = vadd.f32 0.0, %v2245
    %v2247 = vpop.f32.mrf.mxu0
    %2248 = vdwg.mxu0
    %2249 = vmatpush.bf16.msra.mxu0 %v2138
    %2250 = vmatpush.bf16.msra.mxu0 %v2136
    %2251 = vmatpush.bf16.msra.mxu0 %v2134
    %2252 = vmatpush.bf16.msra.mxu0 %v2132
    %2253 = vmatpush.bf16.msra.mxu0 %v2130
    %2254 = vmatpush.bf16.msra.mxu0 %v2128
    %2255 = vmatpush.bf16.msra.mxu0 %v2126
    %2256 = vmatpush.bf16.msra.mxu0 %v2124
    %2257 = vmatmul.bf16.gmra.mxu0 %v1849
    %v2258 = vpop.f32.mrf.mxu0
    %v2259 = vadd.f32 %v2246, %v2258
    %v2260 = vpop.f32.mrf.mxu0
    %2261 = vdwg.mxu0
    %2262 = vmatpush.bf16.msra.mxu0 %v2154
    %2263 = vmatpush.bf16.msra.mxu0 %v2152
    %2264 = vmatpush.bf16.msra.mxu0 %v2150
    %2265 = vmatpush.bf16.msra.mxu0 %v2148
    %2266 = vmatpush.bf16.msra.mxu0 %v2146
    %2267 = vmatpush.bf16.msra.mxu0 %v2144
    %2268 = vmatpush.bf16.msra.mxu0 %v2142
    %2269 = vmatpush.bf16.msra.mxu0 %v2140
    %2270 = vmatmul.bf16.gmra.mxu0 %v1850
    %v2271 = vpop.f32.mrf.mxu0
    %v2272 = vadd.f32 %v2259, %v2271
    %v2273 = vpop.f32.mrf.mxu0
    %2274 = vdwg.mxu0
    %2275 = vmatpush.bf16.msra.mxu0 %v2170
    %2276 = vmatpush.bf16.msra.mxu0 %v2168
    %2277 = vmatpush.bf16.msra.mxu0 %v2166
    %2278 = vmatpush.bf16.msra.mxu0 %v2164
    %2279 = vmatpush.bf16.msra.mxu0 %v2162
    %2280 = vmatpush.bf16.msra.mxu0 %v2160
    %2281 = vmatpush.bf16.msra.mxu0 %v2158
    %2282 = vmatpush.bf16.msra.mxu0 %v2156
    %2283 = vmatmul.bf16.gmra.mxu0 %v1851
    %v2284 = vpop.f32.mrf.mxu0
    %v2285 = vadd.f32 %v2272, %v2284
    %v2286 = vpop.f32.mrf.mxu0
    %2287 = vdwg.mxu0
    %2288 = vmatpush.bf16.msra.mxu0 %v2123
    %2289 = vmatpush.bf16.msra.mxu0 %v2121
    %2290 = vmatpush.bf16.msra.mxu0 %v2119
    %2291 = vmatpush.bf16.msra.mxu0 %v2117
    %2292 = vmatpush.bf16.msra.mxu0 %v2115
    %2293 = vmatpush.bf16.msra.mxu0 %v2113
    %2294 = vmatpush.bf16.msra.mxu0 %v2111
    %2295 = vmatpush.bf16.msra.mxu0 %v2109
    %2296 = vmatmul.bf16.gmra.mxu0 %v1848
    %v2297 = vpop.f32.mrf.mxu0
    %v2298 = vadd.f32 0.0, %v2297
    %v2299 = vpop.f32.mrf.mxu0
    %2300 = vdwg.mxu0
    %2301 = vmatpush.bf16.msra.mxu0 %v2139
    %2302 = vmatpush.bf16.msra.mxu0 %v2137
    %2303 = vmatpush.bf16.msra.mxu0 %v2135
    %2304 = vmatpush.bf16.msra.mxu0 %v2133
    %2305 = vmatpush.bf16.msra.mxu0 %v2131
    %2306 = vmatpush.bf16.msra.mxu0 %v2129
    %2307 = vmatpush.bf16.msra.mxu0 %v2127
    %2308 = vmatpush.bf16.msra.mxu0 %v2125
    %2309 = vmatmul.bf16.gmra.mxu0 %v1849
    %v2310 = vpop.f32.mrf.mxu0
    %v2311 = vadd.f32 %v2298, %v2310
    %v2312 = vpop.f32.mrf.mxu0
    %2313 = vdwg.mxu0
    %2314 = vmatpush.bf16.msra.mxu0 %v2155
    %2315 = vmatpush.bf16.msra.mxu0 %v2153
    %2316 = vmatpush.bf16.msra.mxu0 %v2151
    %2317 = vmatpush.bf16.msra.mxu0 %v2149
    %2318 = vmatpush.bf16.msra.mxu0 %v2147
    %2319 = vmatpush.bf16.msra.mxu0 %v2145
    %2320 = vmatpush.bf16.msra.mxu0 %v2143
    %2321 = vmatpush.bf16.msra.mxu0 %v2141
    %2322 = vmatmul.bf16.gmra.mxu0 %v1850
    %v2323 = vpop.f32.mrf.mxu0
    %v2324 = vadd.f32 %v2311, %v2323
    %v2325 = vpop.f32.mrf.mxu0
    %2326 = vdwg.mxu0
    %2327 = vmatpush.bf16.msra.mxu0 %v2171
    %2328 = vmatpush.bf16.msra.mxu0 %v2169
    %2329 = vmatpush.bf16.msra.mxu0 %v2167
    %2330 = vmatpush.bf16.msra.mxu0 %v2165
    %2331 = vmatpush.bf16.msra.mxu0 %v2163
    %2332 = vmatpush.bf16.msra.mxu0 %v2161
    %2333 = vmatpush.bf16.msra.mxu0 %v2159
    %2334 = vmatpush.bf16.msra.mxu0 %v2157
    %2335 = vmatmul.bf16.gmra.mxu0 %v1851
    %v2336 = vpop.f32.mrf.mxu0
    %v2337 = vadd.f32 %v2324, %v2336
    %v2338 = vpop.f32.mrf.mxu0
    %2339 = vdwg.mxu0
    %v2340 = vld [vmem:[%s5] sm:$0x3]
    %v2341 = vld [vmem:[#allocation10] sm:$0x3]
    %v2342 = vrot.slane %v2285, 4
    %v2343 = vadd.f32 %v2285, %v2342
    %v2344 = vrot.slane %v2343, 2
    %v2345 = vadd.f32 %v2343, %v2344
    %v2346 = vrot.slane %v2345, 1
    %v2347 = vadd.f32 %v2345, %v2346
    %v2348 = vrot.slane %v2337, 4
    %v2349 = vadd.f32 %v2337, %v2348
    %v2350 = vrot.slane %v2349, 2
    %v2351 = vadd.f32 %v2349, %v2350
    %v2352 = vrot.slane %v2351, 1
    %v2353 = vadd.f32 %v2351, %v2352
    %v2354 = vmul.f32 %v2347, 0.125
    %v2355 = vmul.f32 %v2353, 0.125
    %v2356 = vmul.f32 %v2285, %v2285
    %v2357 = vmul.f32 %v2337, %v2337
    %v2358 = vrot.slane %v2356, 4
    %v2359 = vadd.f32 %v2356, %v2358
    %v2360 = vrot.slane %v2359, 2
    %v2361 = vadd.f32 %v2359, %v2360
    %v2362 = vrot.slane %v2361, 1
    %v2363 = vadd.f32 %v2361, %v2362
    %v2364 = vrot.slane %v2357, 4
    %v2365 = vadd.f32 %v2357, %v2364
    %v2366 = vrot.slane %v2365, 2
    %v2367 = vadd.f32 %v2365, %v2366
    %v2368 = vrot.slane %v2367, 1
    %v2369 = vadd.f32 %v2367, %v2368
    %v2370 = vmul.f32 %v2363, 0.125
    %v2371 = vmul.f32 %v2369, 0.125
    %v2372 = vmul.f32 %v2354, %v2354
    %v2373 = vmul.f32 %v2355, %v2355
    %v2374 = vsub.f32 %v2370, %v2372
    %v2375 = vsub.f32 %v2371, %v2373
    %v2376 = vmax.f32 %v2374, 0.0
    %v2377 = vmax.f32 %v2375, 0.0
    %v2378 = vadd.f32 %v2376, 1e-05
    %v2379 = vadd.f32 %v2377, 1e-05
    %v2380 = vrsqrt.pop %v2378
    %v2381 = vmul.f32 %v2380, %v2378
    %v2382 = vmul.f32 %v2381, %v2380
    %v2383 = vmul.f32 0.5, %v2382
    %v2384 = vsub.f32 1.5, %v2383
    %v2385 = vmul.f32 %v2380, %v2384
    %vm2386 = vweird.f32 %v2378
    %vm2387 = vweird.f32 %v2380
    %vm2388 = vmor %vm2386, %vm2387
    %v2389 = vsel %vm2388, %v2380, %v2385
    %v2390 = vrsqrt.pop %v2379
    %v2391 = vmul.f32 %v2390, %v2379
    %v2392 = vmul.f32 %v2391, %v2390
    %v2393 = vmul.f32 0.5, %v2392
    %v2394 = vsub.f32 1.5, %v2393
    %v2395 = vmul.f32 %v2390, %v2394
    %vm2396 = vweird.f32 %v2379
    %vm2397 = vweird.f32 %v2390
    %vm2398 = vmor %vm2396, %vm2397
    %v2399 = vsel %vm2398, %v2390, %v2395
    %v2402 = vrot.slane %v2399, 7
    %v2403 = vsel %vm1790, %v2389, %v2402
    %v2405 = vmul.f32 %v2340, %v2403
    %v2407 = vperm.slane %v2405, 0
    %v2408 = vperm.slane %v2405, 1
    %v2411 = vmul.f32 %v2354, %v2407
    %v2412 = vmul.f32 %v2355, %v2408
    %v2415 = vrot.slane %v2412, 7
    %v2416 = vsel %vm1790, %v2411, %v2415
    %v2418 = vsub.f32 %v2341, %v2416
    %v2419 = vmul.f32 %v2285, %v2407
    %v2420 = vmul.f32 %v2337, %v2408
    %v2422 = vperm.slane %v2418, 0
    %v2423 = vperm.slane %v2418, 1
    %v2426 = vadd.f32 %v2419, %v2422
    %v2427 = vadd.f32 %v2420, %v2423
    %v2428 = vmul.f32 %v2426, 0.2
    %v2429 = vmul.f32 %v2427, 0.2
    %v2430 = vmax.f32 %v2426, %v2428
    %v2431 = vmax.f32 %v2427, %v2429
    %v2432 = vld [vmem:[%s7] sm:$0x3]
    %v2434 = vperm.slane %v2432, 0
    %v2435 = vperm.slane %v2432, 1
    %v2438 = vmul.f32 %v2430, %v2434
    %v2439 = vmul.f32 %v2431, %v2435
    %v2440 = vadd.f32 %v2438, %v2439
    %2441 = vadd.xlane.f32.xlu0 %v2440
    %v2442 = vpop.xlane.xlu0 %2441
    %v2443 = vld [vmem:[#allocation2] sm:$0x1]
    %v2445 = vperm.slane %v2443, 0
    %v2447 = vadd.f32 %v2442, %v2445
    %v2448 = vsub.f32 0.0, %v2447
    %v2449 = vmul.f32 %v2448, 1.442695
    %v2450 = vpow.pop %v2449
    %v2451 = vadd.f32 %v2450, 1.0
    %v2452 = vrcp.pop %v2451
    %v2453 = vmul.f32 %v2451, %v2452
    %v2454 = vsub.f32 1.0, %v2453
    %v2455 = vmul.f32 %v2452, %v2454
    %v2456 = vadd.f32 %v2452, %v2455
    %vm2457 = vweird.f32 %v2451
    %vm2458 = vweird.f32 %v2452
    %vm2459 = vmor %vm2457, %vm2458
    %v2460 = vsel %vm2459, %v2452, %v2456
    %v2461 = vand.u32 2147483647, %v2451
    %vm2462 = vcmp.eq.f32.partialorder %v2461, 8.507059e+37
    %v2463 = vand.u32 %v2451, 2147483648
    %v2464 = vor.u32 1.1754944e-38, %v2463
    %v2465 = vsel %vm2462, %v2464, %v2460
    %v2466 = vmul.f32 1.0, %v2465
    %vm2467 = vcmask 7168
    %2468 = vst.msk [vmem:[%s9] sm:$0xff] %vm2467, %v2466
    // Predicated region
    $region58: #{tpu_custom_call.1} parent=1 // pred_check
      _
    $region59: #{tpu_custom_call.1} parent=1 // pred_check_branch
      %2470 = sbr.rel (0) target = $region61
    $region60: #{tpu_custom_call.1} parent=1 // pred_region
      _
    $region61: #{tpu_custom_call.1} parent=1 // pred_fallthru
      _
    // Predicated region
    $region62: #{tpu_custom_call.1} parent=1 // pred_check
      _
    $region63: #{tpu_custom_call.1} parent=1 // pred_check_branch
      %2472 = sbr.rel (0) target = $region65
    $region64: #{tpu_custom_call.1} parent=1 // pred_region
      _
    $region65: #{tpu_custom_call.1} parent=1 // pred_fallthru
      _
    %2473 = vsyncpa [#allocation4], 1
    %2474 = vsyncpa [#allocation6], 1
    %2475 = vsyncpa [#allocation9], 1

</llo_original>
